<compile_context>
chip_gen: v6e
topology: v6e:2x2x1
jax: 0.10.0
libtpu: 0.0.40
codegen_flags: <defaults>
</compile_context>

<pallas_src>
import jax
import jax.numpy as jnp
import numpy as np
from jax.experimental import pallas as pl
from jax.experimental.pallas import tpu as pltpu


def _cdiv(a, b):
    return -(-a // b)


def rnn_memory_updater_kernel(
    mem_input_ref, ts_ref, mem_ts_ref, mem_ref, h_ref,   # per-node inputs (bf16 / f32 ts)
    tw_ref, tb_ref,                                      # TimeEncode params (f32)
    w_rnn_ref, b_rnn_ref,                                # fused RNNCell weight (bf16) / bias (f32)
    w_nf_ref, b_nf_ref,                                  # node_feat_map weight (bf16) / bias (f32)
    upd_ref, newh_ref,                                   # outputs (f32)
):
    # --- TimeEncode; element-wise math in f32 (v5e VPU/EUP have no bf16 path) ---
    dt = ts_ref[...] - mem_ts_ref[...]                          # [tn, 1] f32
    time_feat = jnp.cos(dt * tw_ref[...] + tb_ref[...])         # [tn, dim_time] f32

    # --- single fused MXU matmul over K = dim_in + dim_time + dim_hid ---
    # Build X = [mem_input | time_feat | mem] (f32 concat, then one cast to bf16 for the MXU).
    x = jnp.concatenate(
        [mem_input_ref[...].astype(jnp.float32),
         time_feat,
         mem_ref[...].astype(jnp.float32)],
        axis=-1,
    ).astype(jnp.bfloat16)
    pre = jnp.dot(x, w_rnn_ref[...], preferred_element_type=jnp.float32) + b_rnn_ref[...]
    updated = jnp.tanh(pre)                                     # f32
    upd_ref[...] = updated.astype(upd_ref.dtype)

    # --- combine_node_feature: updated + Linear(h) (identity / zero variants set by wrapper) ---
    newh_ref[...] = (
        updated
        + jnp.dot(h_ref[...], w_nf_ref[...], preferred_element_type=jnp.float32)
        + b_nf_ref[...]
    ).astype(newh_ref.dtype)


def rnn_memory_updater(
    mem_input, ts, mem_ts, mem, h, nid,
    time_w, time_b, w_ih, b_ih, w_hh, b_hh, w_nf=None, b_nf=None,
    *, combine_node_feature=True, tile_n=1024, pad_out_lanes=False,
):
    """Wrapper: parameter fusion / re-layout, N padding, and the pallas_call."""
    n, dim_in = mem_input.shape
    dim_hid = mem.shape[1]
    dim_time = time_w.shape[0]
    # TODO(synk): dim_time == 0 branch (no TimeEncode / no concat) is not ported.
    assert dim_time > 0
    dim_node_feat = 0 if h is None else h.shape[1]

    # ---- node-feature branch dispatch (single kernel, different W_nf/b_nf) ----
    if dim_node_feat > 0 and dim_node_feat != dim_hid:
        h_in, w_nf_m, b_nf_v = h, w_nf.T, b_nf
    elif dim_node_feat > 0:  # dim_node_feat == dim_hid : h_out = updated + h
        h_in = h
        w_nf_m = jnp.eye(dim_hid, dtype=jnp.float32)
        b_nf_v = jnp.zeros((dim_hid,), jnp.float32)
    else:  # dim_node_feat == 0 : h_out = updated
        h_in = jnp.zeros((n, 8), jnp.float32)
        w_nf_m = jnp.zeros((8, dim_hid), jnp.float32)
        b_nf_v = jnp.zeros((dim_hid,), jnp.float32)
    h_dim = h_in.shape[1]

    # ---- tiling: big node tiles (multiple of 16 for bf16 sublane packing), pad N ----
    tile_n = max(16, min(int(tile_n), _cdiv(n, 16) * 16))
    tile_n -= tile_n % 16
    n_pad = _cdiv(n, tile_n) * tile_n

    # ---- optional lane-dense output padding (off by default for small dim_hid) ----
    dim_hid_o = _cdiv(dim_hid, 128) * 128 if pad_out_lanes else dim_hid
    opad = dim_hid_o - dim_hid

    # ---- one-time parameter fusion / re-layout: x @ W layout, fused K, fused bias ----
    dim_k = dim_in + dim_time + dim_hid
    w_rnn = jnp.concatenate([w_ih.T, w_hh.T], axis=0)                 # [dim_k, dim_hid]
    w_rnn = jnp.pad(w_rnn, ((0, 0), (0, opad))).astype(jnp.bfloat16)
    b_rnn = jnp.pad((b_ih + b_hh).reshape(1, dim_hid),
                    ((0, 0), (0, opad))).astype(jnp.float32)
    w_nf_p = jnp.pad(w_nf_m, ((0, 0), (0, opad))).astype(jnp.bfloat16)
    b_nf_p = jnp.pad(b_nf_v.reshape(1, dim_hid),
                     ((0, 0), (0, opad))).astype(jnp.float32)
    tw = time_w.reshape(1, dim_time).astype(jnp.float32)
    tb = time_b.reshape(1, dim_time).astype(jnp.float32)

    # ---- activations: bf16 for MXU operands (f32 accumulation in-kernel), pad N rows ----
    def pad_rows(a):
        if a.shape[0] == n_pad:
            return a
        return jnp.pad(a, ((0, n_pad - a.shape[0]),) + ((0, 0),) * (a.ndim - 1))

    mem_input_b = pad_rows(mem_input.astype(jnp.bfloat16))
    mem_b = pad_rows(mem.astype(jnp.bfloat16))
    h_b = pad_rows(h_in.astype(jnp.bfloat16))
    ts_2d = pad_rows(ts.reshape(n, 1).astype(jnp.float32))
    mem_ts_2d = pad_rows(mem_ts.reshape(n, 1).astype(jnp.float32))

    grid = (n_pad // tile_n,)
    row = lambda i: (i, 0)
    fixed = lambda i: (0, 0)
    # NOTE: the weight/bias specs use a constant index_map so they stay resident; if the
    # feature dims ever grow, mark them pipeline_mode=pl.Buffered(1) to drop the 2nd buffer.

    upd_p, newh_p = pl.pallas_call(
        rnn_memory_updater_kernel,
        out_shape=(
            jax.ShapeDtypeStruct((n_pad, dim_hid_o), jnp.float32),
            jax.ShapeDtypeStruct((n_pad, dim_hid_o), jnp.float32),
        ),
        grid_spec=pl.GridSpec(
            grid=grid,
            in_specs=[
                pl.BlockSpec((tile_n, dim_in), row),       # mem_input
                pl.BlockSpec((tile_n, 1), row),            # ts
                pl.BlockSpec((tile_n, 1), row),            # mem_ts
                pl.BlockSpec((tile_n, dim_hid), row),      # mem
                pl.BlockSpec((tile_n, h_dim), row),        # h
                pl.BlockSpec((1, dim_time), fixed),        # time_w
                pl.BlockSpec((1, dim_time), fixed),        # time_b
                pl.BlockSpec((dim_k, dim_hid_o), fixed),   # fused RNN weight
                pl.BlockSpec((1, dim_hid_o), fixed),       # fused RNN bias
                pl.BlockSpec((h_dim, dim_hid_o), fixed),   # node_feat_map weight
                pl.BlockSpec((1, dim_hid_o), fixed),       # node_feat_map bias
            ],
            out_specs=[
                pl.BlockSpec((tile_n, dim_hid_o), row),
                pl.BlockSpec((tile_n, dim_hid_o), row),
            ],
        ),
        compiler_params=pltpu.CompilerParams(
            dimension_semantics=("parallel",),
            vmem_limit_bytes=64 * 1024 * 1024,
        ),
    )(
        mem_input_b, ts_2d, mem_ts_2d, mem_b, h_b,
        tw, tb, w_rnn, b_rnn, w_nf_p, b_nf_p,
    )

    updated_memory = upd_p[:n, :dim_hid]
    new_h = newh_p[:n, :dim_hid] if combine_node_feature else h

    # Module bookkeeping (detach().clone() equivalents — pure copies, no compute):
    last_updated_memory = updated_memory
    last_updated_ts = ts
    last_updated_nid = nid
    return updated_memory, new_h, last_updated_memory, last_updated_ts, last_updated_nid


def reference_f32(mem_input, ts, mem_ts, mem, h, time_w, time_b,
                  w_ih, b_ih, w_hh, b_hh, w_nf, b_nf):
    dt = (ts - mem_ts).reshape(-1, 1)
    time_feat = jnp.cos(dt * time_w.reshape(1, -1) + time_b.reshape(1, -1))
    x = jnp.concatenate([mem_input, time_feat], axis=1)
    upd = jnp.tanh(x @ w_ih.T + b_ih + mem @ w_hh.T + b_hh)
    new_h = upd + (h @ w_nf.T + b_nf)
    return upd, new_h


def reference_bf16(mem_input, ts, mem_ts, mem, h, time_w, time_b,
                   w_ih, b_ih, w_hh, b_hh, w_nf, b_nf):
    # Mirrors the kernel's bf16 MXU operands / f32 accumulation.
    q = lambda a: a.astype(jnp.bfloat16).astype(jnp.float32)
    dt = (ts - mem_ts).reshape(-1, 1)
    time_feat = q(jnp.cos(dt * time_w.reshape(1, -1) + time_b.reshape(1, -1)))
    x = jnp.concatenate([q(mem_input), time_feat, q(mem)], axis=1)
    w_rnn = q(jnp.concatenate([w_ih.T, w_hh.T], axis=0))
    upd = jnp.tanh(x @ w_rnn + (b_ih + b_hh).reshape(1, -1))
    new_h = upd + q(h) @ q(w_nf.T) + b_nf.reshape(1, -1)
    return upd, new_h


if __name__ == "__main__":
    # Small shapes consistent with the module's forward; N not a multiple of the tile
    # to exercise the padding path.
    N = 50                 # number of src nodes in the block
    DIM_IN = 32            # dim of mem_input (before time-feature concat)
    DIM_HID = 32           # RNNCell hidden size / memory dim
    DIM_TIME = 16          # time encoding dim (> 0)
    DIM_NODE_FEAT = 24     # node feature dim (!= dim_hid -> exercises node_feat_map)

    key = jax.random.PRNGKey(0)
    ks = jax.random.split(key, 12)

    mem_input = jax.random.normal(ks[0], (N, DIM_IN), jnp.float32)
    ts = jax.random.uniform(ks[1], (N,), jnp.float32, 0.0, 100.0)
    mem_ts = ts - jax.random.uniform(ks[2], (N,), jnp.float32, 0.0, 10.0)
    mem = jax.random.normal(ks[3], (N, DIM_HID), jnp.float32)
    h = jax.random.normal(ks[4], (N, DIM_NODE_FEAT), jnp.float32)
    nid = jnp.arange(N, dtype=jnp.int32)

    # TimeEncode params (TGN-style fixed encoder: w = 1/10^linspace(0,9,d), b = 0).
    time_w = jnp.asarray(1.0 / 10 ** np.linspace(0, 9, DIM_TIME, dtype=np.float32))
    time_b = jnp.zeros((DIM_TIME,), jnp.float32)

    # nn.RNNCell(DIM_IN + DIM_TIME, DIM_HID) parameters, deterministic init.
    bound = 1.0 / np.sqrt(DIM_HID)
    w_ih = jax.random.uniform(ks[5], (DIM_HID, DIM_IN + DIM_TIME), jnp.float32, -bound, bound)
    b_ih = jax.random.uniform(ks[6], (DIM_HID,), jnp.float32, -bound, bound)
    w_hh = jax.random.uniform(ks[7], (DIM_HID, DIM_HID), jnp.float32, -bound, bound)
    b_hh = jax.random.uniform(ks[8], (DIM_HID,), jnp.float32, -bound, bound)

    # node_feat_map = nn.Linear(DIM_NODE_FEAT, DIM_HID)
    nb = 1.0 / np.sqrt(DIM_NODE_FEAT)
    w_nf = jax.random.uniform(ks[9], (DIM_HID, DIM_NODE_FEAT), jnp.float32, -nb, nb)
    b_nf = jax.random.uniform(ks[10], (DIM_HID,), jnp.float32, -nb, nb)

    upd, new_h, last_mem, last_ts, last_nid = rnn_memory_updater(
        mem_input, ts, mem_ts, mem, h, nid,
        time_w, time_b, w_ih, b_ih, w_hh, b_hh, w_nf, b_nf,
    )
    jax.block_until_ready((upd, new_h, last_mem, last_ts, last_nid))

    # Tight check against a reference that mirrors the bf16 MXU quantization...
    bupd, bh = reference_bf16(mem_input, ts, mem_ts, mem, h, time_w, time_b,
                              w_ih, b_ih, w_hh, b_hh, w_nf, b_nf)
    assert jnp.allclose(upd, bupd, atol=2e-2, rtol=2e-2)
    assert jnp.allclose(new_h, bh, atol=2e-2, rtol=2e-2)
    # ...and a looser check against the exact f32 module math.
    fupd, fh = reference_f32(mem_input, ts, mem_ts, mem, h, time_w, time_b,
                             w_ih, b_ih, w_hh, b_hh, w_nf, b_nf)
    assert jnp.allclose(upd, fupd, atol=6e-2, rtol=6e-2)
    assert jnp.allclose(new_h, fh, atol=6e-2, rtol=6e-2)
    assert jnp.array_equal(last_ts, ts) and jnp.array_equal(last_nid, nid)
    assert jnp.array_equal(last_mem, upd)

    print("KERNEL_OK")
</pallas_src>

<mosaic_0001>
module attributes {stable_mosaic.version = 11 : i64} {
  func.func @rnn_memory_updater_kernel(%arg0: i32, %arg1: memref<64x32xbf16, #tpu.memory_space<vmem>>, %arg2: memref<64x1xf32, #tpu.memory_space<vmem>>, %arg3: memref<64x1xf32, #tpu.memory_space<vmem>>, %arg4: memref<64x32xbf16, #tpu.memory_space<vmem>>, %arg5: memref<64x24xbf16, #tpu.memory_space<vmem>>, %arg6: memref<1x16xf32, #tpu.memory_space<vmem>>, %arg7: memref<1x16xf32, #tpu.memory_space<vmem>>, %arg8: memref<80x32xbf16, #tpu.memory_space<vmem>>, %arg9: memref<1x32xf32, #tpu.memory_space<vmem>>, %arg10: memref<24x32xbf16, #tpu.memory_space<vmem>>, %arg11: memref<1x32xf32, #tpu.memory_space<vmem>>, %arg12: memref<64x32xf32, #tpu.memory_space<vmem>>, %arg13: memref<64x32xf32, #tpu.memory_space<vmem>>) attributes {dimension_semantics = [#tpu.dimension_semantics<parallel>], iteration_bounds = array<i64: 1>, scalar_prefetch = 0 : i64, scratch_operands = 0 : i64, tpu.core_type = #tpu.core_type<tc>, window_params = [{transform_indices = @transform_0, window_bounds = array<i64: 64, 32>}, {transform_indices = @transform_1, window_bounds = array<i64: 64, 1>}, {transform_indices = @transform_2, window_bounds = array<i64: 64, 1>}, {transform_indices = @transform_3, window_bounds = array<i64: 64, 32>}, {transform_indices = @transform_4, window_bounds = array<i64: 64, 24>}, {pipeline_mode = #tpu.pipeline_mode<synchronous>, transform_indices = @transform_5, window_bounds = array<i64: 1, 16>}, {pipeline_mode = #tpu.pipeline_mode<synchronous>, transform_indices = @transform_6, window_bounds = array<i64: 1, 16>}, {pipeline_mode = #tpu.pipeline_mode<synchronous>, transform_indices = @transform_7, window_bounds = array<i64: 80, 32>}, {pipeline_mode = #tpu.pipeline_mode<synchronous>, transform_indices = @transform_8, window_bounds = array<i64: 1, 32>}, {pipeline_mode = #tpu.pipeline_mode<synchronous>, transform_indices = @transform_9, window_bounds = array<i64: 24, 32>}, {pipeline_mode = #tpu.pipeline_mode<synchronous>, transform_indices = @transform_10, window_bounds = array<i64: 1, 32>}, {transform_indices = @transform_11, window_bounds = array<i64: 64, 32>}, {transform_indices = @transform_12, window_bounds = array<i64: 64, 32>}]} {
    %c0 = arith.constant 0 : index
    %c0_0 = arith.constant 0 : index
    %0 = vector.load %arg2[%c0, %c0_0] : memref<64x1xf32, #tpu.memory_space<vmem>>, vector<64x1xf32>
    %c0_1 = arith.constant 0 : index
    %c0_2 = arith.constant 0 : index
    %1 = vector.load %arg3[%c0_1, %c0_2] : memref<64x1xf32, #tpu.memory_space<vmem>>, vector<64x1xf32>
    %2 = arith.subf %0, %1 : vector<64x1xf32>
    %c0_3 = arith.constant 0 : index
    %c0_4 = arith.constant 0 : index
    %3 = vector.load %arg6[%c0_3, %c0_4] : memref<1x16xf32, #tpu.memory_space<vmem>>, vector<1x16xf32>
    %4 = vector.broadcast %2 : vector<64x1xf32> to vector<64x16xf32>
    %5 = vector.broadcast %3 : vector<1x16xf32> to vector<64x16xf32>
    %6 = arith.mulf %4, %5 : vector<64x16xf32>
    %c0_5 = arith.constant 0 : index
    %c0_6 = arith.constant 0 : index
    %7 = vector.load %arg7[%c0_5, %c0_6] : memref<1x16xf32, #tpu.memory_space<vmem>>, vector<1x16xf32>
    %8 = vector.broadcast %7 : vector<1x16xf32> to vector<64x16xf32>
    %9 = arith.addf %6, %8 : vector<64x16xf32>
    %10 = math.cos %9 : vector<64x16xf32>
    %c0_7 = arith.constant 0 : index
    %c0_8 = arith.constant 0 : index
    %11 = vector.load %arg1[%c0_7, %c0_8] : memref<64x32xbf16, #tpu.memory_space<vmem>>, vector<64x32xbf16>
    %12 = arith.extf %11 : vector<64x32xbf16> to vector<64x32xf32>
    %c0_9 = arith.constant 0 : index
    %c0_10 = arith.constant 0 : index
    %13 = vector.load %arg4[%c0_9, %c0_10] : memref<64x32xbf16, #tpu.memory_space<vmem>>, vector<64x32xbf16>
    %14 = arith.extf %13 : vector<64x32xbf16> to vector<64x32xf32>
    %15 = tpu.concatenate %12, %10, %14 in 1 : vector<64x32xf32>, vector<64x16xf32>, vector<64x32xf32> -> vector<64x80xf32>
    %16 = arith.truncf %15 : vector<64x80xf32> to vector<64x80xbf16>
    %c0_11 = arith.constant 0 : index
    %c0_12 = arith.constant 0 : index
    %17 = vector.load %arg8[%c0_11, %c0_12] : memref<80x32xbf16, #tpu.memory_space<vmem>>, vector<80x32xbf16>
    %cst = arith.constant dense<0.000000e+00> : vector<64x32xf32>
    %18 = tpu.matmul %16, %17, %cst {dimension_numbers = #tpu.dot_dimension_numbers<[1], [0], [0], [1], [0, 0, 1, 1], [], []>} : vector<64x80xbf16>, vector<80x32xbf16>, vector<64x32xf32> -> vector<64x32xf32>
    %c0_13 = arith.constant 0 : index
    %c0_14 = arith.constant 0 : index
    %19 = vector.load %arg9[%c0_13, %c0_14] : memref<1x32xf32, #tpu.memory_space<vmem>>, vector<1x32xf32>
    %20 = vector.broadcast %19 : vector<1x32xf32> to vector<64x32xf32>
    %21 = arith.addf %18, %20 : vector<64x32xf32>
    %22 = math.tanh %21 : vector<64x32xf32>
    %c0_15 = arith.constant 0 : index
    %c0_16 = arith.constant 0 : index
    %23 = vector.load %arg12[%c0_15, %c0_16] : memref<64x32xf32, #tpu.memory_space<vmem>>, vector<64x32xf32>
    tpu.vector_store %arg12[%c0_15, %c0_16], %22 {strides = array<i32>} : memref<64x32xf32, #tpu.memory_space<vmem>>, vector<64x32xf32>,
    %c0_17 = arith.constant 0 : index
    %c0_18 = arith.constant 0 : index
    %24 = vector.load %arg5[%c0_17, %c0_18] : memref<64x24xbf16, #tpu.memory_space<vmem>>, vector<64x24xbf16>
    %c0_19 = arith.constant 0 : index
    %c0_20 = arith.constant 0 : index
    %25 = vector.load %arg10[%c0_19, %c0_20] : memref<24x32xbf16, #tpu.memory_space<vmem>>, vector<24x32xbf16>
    %cst_21 = arith.constant dense<0.000000e+00> : vector<64x32xf32>
    %26 = tpu.matmul %24, %25, %cst_21 {dimension_numbers = #tpu.dot_dimension_numbers<[1], [0], [0], [1], [0, 0, 1, 1], [], []>} : vector<64x24xbf16>, vector<24x32xbf16>, vector<64x32xf32> -> vector<64x32xf32>
    %27 = arith.addf %22, %26 : vector<64x32xf32>
    %c0_22 = arith.constant 0 : index
    %c0_23 = arith.constant 0 : index
    %28 = vector.load %arg11[%c0_22, %c0_23] : memref<1x32xf32, #tpu.memory_space<vmem>>, vector<1x32xf32>
    %29 = vector.broadcast %28 : vector<1x32xf32> to vector<64x32xf32>
    %30 = arith.addf %27, %29 : vector<64x32xf32>
    %c0_24 = arith.constant 0 : index
    %c0_25 = arith.constant 0 : index
    %31 = vector.load %arg13[%c0_24, %c0_25] : memref<64x32xf32, #tpu.memory_space<vmem>>, vector<64x32xf32>
    tpu.vector_store %arg13[%c0_24, %c0_25], %30 {strides = array<i32>} : memref<64x32xf32, #tpu.memory_space<vmem>>, vector<64x32xf32>,
    return
  }
  func.func @transform_0(%arg0: i32) -> (i32, i32) {
    %c0_i32 = arith.constant 0 : i32
    %c0_i32_0 = arith.constant 0 : i32
    return %arg0, %c0_i32 : i32, i32
  }
  func.func @transform_1(%arg0: i32) -> (i32, i32) {
    %c0_i32 = arith.constant 0 : i32
    %c0_i32_0 = arith.constant 0 : i32
    return %arg0, %c0_i32 : i32, i32
  }
  func.func @transform_2(%arg0: i32) -> (i32, i32) {
    %c0_i32 = arith.constant 0 : i32
    %c0_i32_0 = arith.constant 0 : i32
    return %arg0, %c0_i32 : i32, i32
  }
  func.func @transform_3(%arg0: i32) -> (i32, i32) {
    %c0_i32 = arith.constant 0 : i32
    %c0_i32_0 = arith.constant 0 : i32
    return %arg0, %c0_i32 : i32, i32
  }
  func.func @transform_4(%arg0: i32) -> (i32, i32) {
    %c0_i32 = arith.constant 0 : i32
    %c0_i32_0 = arith.constant 0 : i32
    return %arg0, %c0_i32 : i32, i32
  }
  func.func @transform_5(%arg0: i32) -> (i32, i32) {
    %c0_i32 = arith.constant 0 : i32
    %c0_i32_0 = arith.constant 0 : i32
    %c0_i32_1 = arith.constant 0 : i32
    return %c0_i32, %c0_i32_0 : i32, i32
  }
  func.func @transform_6(%arg0: i32) -> (i32, i32) {
    %c0_i32 = arith.constant 0 : i32
    %c0_i32_0 = arith.constant 0 : i32
    %c0_i32_1 = arith.constant 0 : i32
    return %c0_i32, %c0_i32_0 : i32, i32
  }
  func.func @transform_7(%arg0: i32) -> (i32, i32) {
    %c0_i32 = arith.constant 0 : i32
    %c0_i32_0 = arith.constant 0 : i32
    %c0_i32_1 = arith.constant 0 : i32
    return %c0_i32, %c0_i32_0 : i32, i32
  }
  func.func @transform_8(%arg0: i32) -> (i32, i32) {
    %c0_i32 = arith.constant 0 : i32
    %c0_i32_0 = arith.constant 0 : i32
    %c0_i32_1 = arith.constant 0 : i32
    return %c0_i32, %c0_i32_0 : i32, i32
  }
  func.func @transform_9(%arg0: i32) -> (i32, i32) {
    %c0_i32 = arith.constant 0 : i32
    %c0_i32_0 = arith.constant 0 : i32
    %c0_i32_1 = arith.constant 0 : i32
    return %c0_i32, %c0_i32_0 : i32, i32
  }
  func.func @transform_10(%arg0: i32) -> (i32, i32) {
    %c0_i32 = arith.constant 0 : i32
    %c0_i32_0 = arith.constant 0 : i32
    %c0_i32_1 = arith.constant 0 : i32
    return %c0_i32, %c0_i32_0 : i32, i32
  }
  func.func @transform_11(%arg0: i32) -> (i32, i32) {
    %c0_i32 = arith.constant 0 : i32
    %c0_i32_0 = arith.constant 0 : i32
    return %arg0, %c0_i32 : i32, i32
  }
  func.func @transform_12(%arg0: i32) -> (i32, i32) {
    %c0_i32 = arith.constant 0 : i32
    %c0_i32_0 = arith.constant 0 : i32
    return %arg0, %c0_i32 : i32, i32
  }
}

</mosaic_0001>

<llo_original>
// kernel: tpu_custom_call.1
$region0: #{tpu_custom_call.1}
  #allocation0 [shape = 'u32[]', space=smem, size = 0x4, offset = 0x4, fixed_abs, tag = 'smem constant byte address 0x4 - core index']
  #allocation1 [shape = 'u32[144,128]{1,0:T(1,128)}', space=vmem, size = 0x12000, scoped, tag = 'internal scratch']
  %s0 = inlined_call_operand.vmem [shape: bf16[64,32], index: 0, kind: input, shape index: {}]
  %s1 = inlined_call_operand.vmem [shape: f32[64,1], index: 1, kind: input, shape index: {}]
  %s2 = inlined_call_operand.vmem [shape: f32[64,1], index: 2, kind: input, shape index: {}]
  %s3 = inlined_call_operand.vmem [shape: bf16[64,32], index: 3, kind: input, shape index: {}]
  %s4 = inlined_call_operand.vmem [shape: bf16[64,24], index: 4, kind: input, shape index: {}]
  %s5 = inlined_call_operand.vmem [shape: f32[1,16], index: 5, kind: input, shape index: {}]
  %s6 = inlined_call_operand.vmem [shape: f32[1,16], index: 6, kind: input, shape index: {}]
  %s7 = inlined_call_operand.vmem [shape: bf16[80,32], index: 7, kind: input, shape index: {}]
  %s8 = inlined_call_operand.vmem [shape: f32[1,32], index: 8, kind: input, shape index: {}]
  %s9 = inlined_call_operand.vmem [shape: bf16[24,32], index: 9, kind: input, shape index: {}]
  %s10 = inlined_call_operand.vmem [shape: f32[1,32], index: 10, kind: input, shape index: {}]
  %s11 = inlined_call_operand.vmem [shape: f32[64,32], index: 11, kind: output, shape index: {0}]
  %s12 = inlined_call_operand.vmem [shape: f32[64,32], index: 12, kind: output, shape index: {1}]
  %13 = xla_tuple %s11, %s12
  %s14 = sld [smem:[#allocation0]]
  $region62: #{tpu_custom_call.1} parent=0
    _
  %s16 = ssub.s32 1, %s14
  %s17 = scalar_select 0, %s16, %s14
  // Predicated region
  $region2: #{tpu_custom_call.1} parent=0 // pred_check
    _
  $region3: #{tpu_custom_call.1} parent=0 // pred_check_branch
    %19 = sbr.rel (0) target = $region5
  $region4: #{tpu_custom_call.1} parent=0 // pred_region
    _
  $region5: #{tpu_custom_call.1} parent=0 // pred_fallthru
    _
  // Predicated region
  $region6: #{tpu_custom_call.1} parent=0 // pred_check
    _
  $region7: #{tpu_custom_call.1} parent=0 // pred_check_branch
    %21 = sbr.rel (0) target = $region9
  $region8: #{tpu_custom_call.1} parent=0 // pred_region
    _
  $region9: #{tpu_custom_call.1} parent=0 // pred_fallthru
    _
  // Predicated region
  $region10: #{tpu_custom_call.1} parent=0 // pred_check
    _
  $region11: #{tpu_custom_call.1} parent=0 // pred_check_branch
    %23 = sbr.rel (0) target = $region13
  $region12: #{tpu_custom_call.1} parent=0 // pred_region
    _
  $region13: #{tpu_custom_call.1} parent=0 // pred_fallthru
    _
  // Predicated region
  $region14: #{tpu_custom_call.1} parent=0 // pred_check
    _
  $region15: #{tpu_custom_call.1} parent=0 // pred_check_branch
    %25 = sbr.rel (0) target = $region17
  $region16: #{tpu_custom_call.1} parent=0 // pred_region
    _
  $region17: #{tpu_custom_call.1} parent=0 // pred_fallthru
    _
  // Predicated region
  $region18: #{tpu_custom_call.1} parent=0 // pred_check
    _
  $region19: #{tpu_custom_call.1} parent=0 // pred_check_branch
    %27 = sbr.rel (0) target = $region21
  $region20: #{tpu_custom_call.1} parent=0 // pred_region
    _
  $region21: #{tpu_custom_call.1} parent=0 // pred_fallthru
    _
  // Predicated region
  $region22: #{tpu_custom_call.1} parent=0 // pred_check
    _
  $region23: #{tpu_custom_call.1} parent=0 // pred_check_branch
    %29 = sbr.rel (0) target = $region25
  $region24: #{tpu_custom_call.1} parent=0 // pred_region
    _
  $region25: #{tpu_custom_call.1} parent=0 // pred_fallthru
    _
  // Predicated region
  $region26: #{tpu_custom_call.1} parent=0 // pred_check
    _
  $region27: #{tpu_custom_call.1} parent=0 // pred_check_branch
    %31 = sbr.rel (0) target = $region29
  $region28: #{tpu_custom_call.1} parent=0 // pred_region
    _
  $region29: #{tpu_custom_call.1} parent=0 // pred_fallthru
    _
  // Predicated region
  $region30: #{tpu_custom_call.1} parent=0 // pred_check
    _
  $region31: #{tpu_custom_call.1} parent=0 // pred_check_branch
    %33 = sbr.rel (0) target = $region33
  $region32: #{tpu_custom_call.1} parent=0 // pred_region
    _
  $region33: #{tpu_custom_call.1} parent=0 // pred_fallthru
    _
  // Predicated region
  $region34: #{tpu_custom_call.1} parent=0 // pred_check
    _
  $region35: #{tpu_custom_call.1} parent=0 // pred_check_branch
    %35 = sbr.rel (0) target = $region37
  $region36: #{tpu_custom_call.1} parent=0 // pred_region
    _
  $region37: #{tpu_custom_call.1} parent=0 // pred_fallthru
    _
  // Predicated region
  $region38: #{tpu_custom_call.1} parent=0 // pred_check
    _
  $region39: #{tpu_custom_call.1} parent=0 // pred_check_branch
    %37 = sbr.rel (0) target = $region41
  $region40: #{tpu_custom_call.1} parent=0 // pred_region
    _
  $region41: #{tpu_custom_call.1} parent=0 // pred_fallthru
    _
  // Predicated region
  $region42: #{tpu_custom_call.1} parent=0 // pred_check
    _
  $region43: #{tpu_custom_call.1} parent=0 // pred_check_branch
    %39 = sbr.rel (0) target = $region45
  $region44: #{tpu_custom_call.1} parent=0 // pred_region
    _
  $region45: #{tpu_custom_call.1} parent=0 // pred_fallthru
    _
  %v41 = vld [vmem:[%s1] sm:$0xff]
  %v42 = vld [vmem:[%s1 + $0x8] sm:$0xff]
  %v43 = vld [vmem:[%s1 + $0x10] sm:$0xff]
  %v44 = vld [vmem:[%s1 + $0x18] sm:$0xff]
  %v45 = vld [vmem:[%s1 + $0x20] sm:$0xff]
  %v46 = vld [vmem:[%s1 + $0x28] sm:$0xff]
  %v47 = vld [vmem:[%s1 + $0x30] sm:$0xff]
  %v48 = vld [vmem:[%s1 + $0x38] sm:$0xff]
  %v49 = vld [vmem:[%s2] sm:$0xff]
  %v50 = vld [vmem:[%s2 + $0x8] sm:$0xff]
  %v51 = vld [vmem:[%s2 + $0x10] sm:$0xff]
  %v52 = vld [vmem:[%s2 + $0x18] sm:$0xff]
  %v53 = vld [vmem:[%s2 + $0x20] sm:$0xff]
  %v54 = vld [vmem:[%s2 + $0x28] sm:$0xff]
  %v55 = vld [vmem:[%s2 + $0x30] sm:$0xff]
  %v56 = vld [vmem:[%s2 + $0x38] sm:$0xff]
  %v57 = vsub.f32 %v41, %v49
  %v58 = vsub.f32 %v42, %v50
  %v59 = vsub.f32 %v43, %v51
  %v60 = vsub.f32 %v44, %v52
  %v61 = vsub.f32 %v45, %v53
  %v62 = vsub.f32 %v46, %v54
  %v63 = vsub.f32 %v47, %v55
  %v64 = vsub.f32 %v48, %v56
  %v65 = vld [vmem:[%s5] sm:$0x1]
  %67 = vset.pattern.permute.xlu0 0
  %68 = vperm.xlu0 %67, %v57
  %v69 = vpop.permute.xlu0 %68
  %72 = vset.pattern.permute.xlu0 0
  %73 = vperm.xlu0 %72, %v58
  %v74 = vpop.permute.xlu0 %73
  %77 = vset.pattern.permute.xlu0 0
  %78 = vperm.xlu0 %77, %v59
  %v79 = vpop.permute.xlu0 %78
  %82 = vset.pattern.permute.xlu0 0
  %83 = vperm.xlu0 %82, %v60
  %v84 = vpop.permute.xlu0 %83
  %87 = vset.pattern.permute.xlu0 0
  %88 = vperm.xlu0 %87, %v61
  %v89 = vpop.permute.xlu0 %88
  %92 = vset.pattern.permute.xlu0 0
  %93 = vperm.xlu0 %92, %v62
  %v94 = vpop.permute.xlu0 %93
  %97 = vset.pattern.permute.xlu0 0
  %98 = vperm.xlu0 %97, %v63
  %v99 = vpop.permute.xlu0 %98
  %102 = vset.pattern.permute.xlu0 0
  %103 = vperm.xlu0 %102, %v64
  %v104 = vpop.permute.xlu0 %103
  %v107 = vlaneseq
  %v108 = vshrl.u32 %v107, 7
  %v109 = vsub.s32 0, %v108
  %v110 = vrot.slane %v65, %v109
  %v112 = vmul.f32 %v69, %v110
  %v113 = vmul.f32 %v74, %v110
  %v114 = vmul.f32 %v79, %v110
  %v115 = vmul.f32 %v84, %v110
  %v116 = vmul.f32 %v89, %v110
  %v117 = vmul.f32 %v94, %v110
  %v118 = vmul.f32 %v99, %v110
  %v119 = vmul.f32 %v104, %v110
  %v120 = vld [vmem:[%s6] sm:$0x1]
  %v122 = vlaneseq
  %v123 = vshrl.u32 %v122, 7
  %v124 = vsub.s32 0, %v123
  %v125 = vrot.slane %v120, %v124
  %v127 = vadd.f32 %v112, %v125
  %v128 = vadd.f32 %v113, %v125
  %v129 = vadd.f32 %v114, %v125
  %v130 = vadd.f32 %v115, %v125
  %v131 = vadd.f32 %v116, %v125
  %v132 = vadd.f32 %v117, %v125
  %v133 = vadd.f32 %v118, %v125
  %v134 = vadd.f32 %v119, %v125
  %v135 = vand.u32 2147483647, %v127
  %vm136 = vcmp.le.f32.partialorder %v135, 0.7853982
  %vm137 = vcmp.lt.s32.totalorder %v127, 0
  %v138 = vand.u32 %v127, 2139095040
  %v139 = vshrl.u32 %v138, 23
  %v140 = vsub.s32 %v139, 127
  %v141 = vand.u32 2147483647, %v127
  %v142 = vand.u32 %v141, 8388607
  %v143 = vor.u32 %v142, 8388608
  %v144 = vsub.s32 0, %v143
  %v145 = vadd.s32 %v140, 1
  %vm146 = vcmp.gt.s32.totalorder %v145, 0
  %v147 = vsel %vm146, %v145, 0
  %v148 = vshrl.u32 %v147, 5
  %v149 = vand.u32 %v147, 31
  %v150 = vsub.s32 32, %v149
  %v151 = vshrl.u32 683565275, %v150
  %v152 = vshll.u32 683565275, %v149
  %v153 = vshrl.u32 2475754826, %v150
  %v154 = vor.u32 %v152, %v153
  %v155 = vshll.u32 2475754826, %v149
  %v156 = vshrl.u32 2131351028, %v150
  %v157 = vor.u32 %v155, %v156
  %v158 = vshll.u32 2131351028, %v149
  %v159 = vshrl.u32 2102212464, %v150
  %v160 = vor.u32 %v158, %v159
  %v161 = vshll.u32 2102212464, %v149
  %v162 = vshrl.u32 920167782, %v150
  %v163 = vor.u32 %v161, %v162
  %v164 = vshll.u32 920167782, %v149
  %v165 = vshrl.u32 1326507024, %v150
  %v166 = vor.u32 %v164, %v165
  %vm167 = vcmp.lt.s32.totalorder %v148, 1
  %vm168 = vcmp.lt.s32.totalorder %v148, 2
  %vm169 = vcmp.lt.s32.totalorder %v148, 3
  %vm170 = vcmp.lt.s32.totalorder %v148, 4
  %v171 = vsel %vm167, %v151, %v154
  %v172 = vsel %vm170, %v160, 2102212464
  %v173 = vsel %vm169, %v157, %v172
  %v174 = vsel %vm168, %v171, %v173
  %v175 = vsel %vm167, %v154, %v157
  %v176 = vsel %vm170, %v163, 920167782
  %v177 = vsel %vm169, %v160, %v176
  %v178 = vsel %vm168, %v175, %v177
  %v179 = vsel %vm167, %v157, %v160
  %v180 = vsel %vm170, %v166, 1326507024
  %v181 = vsel %vm169, %v163, %v180
  %v182 = vsel %vm168, %v179, %v181
  %v183 = vshll.u32 %v143, 8
  %v184 = vmul.u32.u64.compose %v183, %v182
  %v185 = vextract.low.u32 %v184
  %v186 = vextract.high.u32 %v184
  %v187 = vmul.u32.u64.compose %v183, %v178
  %v188 = vextract.low.u32 %v187
  %v189 = vextract.high.u32 %v187
  %v190 = vmul.u32 %v183, %v174
  %v191 = vadd.s32 %v186, %v188
  %vm192 = vc.u32 %v186, %v188
  %v193 = vadd.s32 %v189, 1
  %v194 = vsel %vm192, %v193, %v189
  %v195 = vadd.s32 %v190, %v194
  %v196 = vadd.s32 %v195, 536870912
  %v197 = vshrl.u32 %v196, 30
  %v198 = vshll.u32 %v197, 30
  %v199 = vsub.s32 %v195, %v198
  %vm200 = vcmp.lt.s32.totalorder %v199, 0
  %v201 = vsub.s32 0, %v199
  %v202 = vsel %vm200, %v201, %v199
  %v203 = vclz %v202
  %v204 = vsub.s32 %v203, 2
  %vm205 = vcmp.gt.s32.totalorder 0, %v204
  %v206 = vsel %vm205, 0, %v204
  %v207 = vsub.s32 32, %v206
  %v208 = vshll.u32 %v199, %v206
  %v209 = vshrl.u32 %v191, %v207
  %v210 = vor.u32 %v208, %v209
  %v211 = vsub.s32 4294967266, %v206
  %v212 = vadd.s32 %v211, 127
  %v213 = vshll.u32 %v212, 23
  %v214 = vor.u32 4788187, %v213
  %v215 = vand.u32 2147483647, %v214
  %v217 = vcvt.s32.f32 %v210
  %v218 = vmul.f32 %v217, %v215
  %v219 = vxor.u32 %v218, 2147483648
  %v220 = vsel %vm137, %v219, %v218
  %v221 = vsub.s32 4, %v197
  %v222 = vsel %vm137, %v221, %v197
  %v223 = vsel %vm136, %v127, %v220
  %v224 = vsel %vm136, 0, %v222
  %v225 = vcosq.f32.pop %v223
  %v226 = vsinq.f32.pop %v223
  %vm227 = vweird.f32 %v127
  %v228 = vand.u32 %v224, 3
  %vm229 = vcmp.lt.s32.totalorder %v228, 2
  %vm230 = vcmp.eq.s32.totalorder %v228, 0
  %v231 = vxor.u32 %v226, 2147483648
  %v232 = vsel %vm230, %v225, %v231
  %vm233 = vcmp.eq.s32.totalorder %v228, 2
  %v234 = vxor.u32 %v225, 2147483648
  %v235 = vsel %vm233, %v234, %v226
  %v236 = vsel %vm229, %v232, %v235
  %v237 = vsel %vm227, nan, %v236
  %v238 = vand.u32 2147483647, %v128
  %vm239 = vcmp.le.f32.partialorder %v238, 0.7853982
  %vm240 = vcmp.lt.s32.totalorder %v128, 0
  %v241 = vand.u32 %v128, 2139095040
  %v242 = vshrl.u32 %v241, 23
  %v243 = vsub.s32 %v242, 127
  %v244 = vand.u32 2147483647, %v128
  %v245 = vand.u32 %v244, 8388607
  %v246 = vor.u32 %v245, 8388608
  %v247 = vsub.s32 0, %v246
  %v248 = vadd.s32 %v243, 1
  %vm249 = vcmp.gt.s32.totalorder %v248, 0
  %v250 = vsel %vm249, %v248, 0
  %v251 = vshrl.u32 %v250, 5
  %v252 = vand.u32 %v250, 31
  %v253 = vsub.s32 32, %v252
  %v254 = vshrl.u32 683565275, %v253
  %v255 = vshll.u32 683565275, %v252
  %v256 = vshrl.u32 2475754826, %v253
  %v257 = vor.u32 %v255, %v256
  %v258 = vshll.u32 2475754826, %v252
  %v259 = vshrl.u32 2131351028, %v253
  %v260 = vor.u32 %v258, %v259
  %v261 = vshll.u32 2131351028, %v252
  %v262 = vshrl.u32 2102212464, %v253
  %v263 = vor.u32 %v261, %v262
  %v264 = vshll.u32 2102212464, %v252
  %v265 = vshrl.u32 920167782, %v253
  %v266 = vor.u32 %v264, %v265
  %v267 = vshll.u32 920167782, %v252
  %v268 = vshrl.u32 1326507024, %v253
  %v269 = vor.u32 %v267, %v268
  %vm270 = vcmp.lt.s32.totalorder %v251, 1
  %vm271 = vcmp.lt.s32.totalorder %v251, 2
  %vm272 = vcmp.lt.s32.totalorder %v251, 3
  %vm273 = vcmp.lt.s32.totalorder %v251, 4
  %v274 = vsel %vm270, %v254, %v257
  %v275 = vsel %vm273, %v263, 2102212464
  %v276 = vsel %vm272, %v260, %v275
  %v277 = vsel %vm271, %v274, %v276
  %v278 = vsel %vm270, %v257, %v260
  %v279 = vsel %vm273, %v266, 920167782
  %v280 = vsel %vm272, %v263, %v279
  %v281 = vsel %vm271, %v278, %v280
  %v282 = vsel %vm270, %v260, %v263
  %v283 = vsel %vm273, %v269, 1326507024
  %v284 = vsel %vm272, %v266, %v283
  %v285 = vsel %vm271, %v282, %v284
  %v286 = vshll.u32 %v246, 8
  %v287 = vmul.u32.u64.compose %v286, %v285
  %v288 = vextract.low.u32 %v287
  %v289 = vextract.high.u32 %v287
  %v290 = vmul.u32.u64.compose %v286, %v281
  %v291 = vextract.low.u32 %v290
  %v292 = vextract.high.u32 %v290
  %v293 = vmul.u32 %v286, %v277
  %v294 = vadd.s32 %v289, %v291
  %vm295 = vc.u32 %v289, %v291
  %v296 = vadd.s32 %v292, 1
  %v297 = vsel %vm295, %v296, %v292
  %v298 = vadd.s32 %v293, %v297
  %v299 = vadd.s32 %v298, 536870912
  %v300 = vshrl.u32 %v299, 30
  %v301 = vshll.u32 %v300, 30
  %v302 = vsub.s32 %v298, %v301
  %vm303 = vcmp.lt.s32.totalorder %v302, 0
  %v304 = vsub.s32 0, %v302
  %v305 = vsel %vm303, %v304, %v302
  %v306 = vclz %v305
  %v307 = vsub.s32 %v306, 2
  %vm308 = vcmp.gt.s32.totalorder 0, %v307
  %v309 = vsel %vm308, 0, %v307
  %v310 = vsub.s32 32, %v309
  %v311 = vshll.u32 %v302, %v309
  %v312 = vshrl.u32 %v294, %v310
  %v313 = vor.u32 %v311, %v312
  %v314 = vsub.s32 4294967266, %v309
  %v315 = vadd.s32 %v314, 127
  %v316 = vshll.u32 %v315, 23
  %v317 = vor.u32 4788187, %v316
  %v318 = vand.u32 2147483647, %v317
  %v320 = vcvt.s32.f32 %v313
  %v321 = vmul.f32 %v320, %v318
  %v322 = vxor.u32 %v321, 2147483648
  %v323 = vsel %vm240, %v322, %v321
  %v324 = vsub.s32 4, %v300
  %v325 = vsel %vm240, %v324, %v300
  %v326 = vsel %vm239, %v128, %v323
  %v327 = vsel %vm239, 0, %v325
  %v328 = vcosq.f32.pop %v326
  %v329 = vsinq.f32.pop %v326
  %vm330 = vweird.f32 %v128
  %v331 = vand.u32 %v327, 3
  %vm332 = vcmp.lt.s32.totalorder %v331, 2
  %vm333 = vcmp.eq.s32.totalorder %v331, 0
  %v334 = vxor.u32 %v329, 2147483648
  %v335 = vsel %vm333, %v328, %v334
  %vm336 = vcmp.eq.s32.totalorder %v331, 2
  %v337 = vxor.u32 %v328, 2147483648
  %v338 = vsel %vm336, %v337, %v329
  %v339 = vsel %vm332, %v335, %v338
  %v340 = vsel %vm330, nan, %v339
  %v341 = vand.u32 2147483647, %v129
  %vm342 = vcmp.le.f32.partialorder %v341, 0.7853982
  %vm343 = vcmp.lt.s32.totalorder %v129, 0
  %v344 = vand.u32 %v129, 2139095040
  %v345 = vshrl.u32 %v344, 23
  %v346 = vsub.s32 %v345, 127
  %v347 = vand.u32 2147483647, %v129
  %v348 = vand.u32 %v347, 8388607
  %v349 = vor.u32 %v348, 8388608
  %v350 = vsub.s32 0, %v349
  %v351 = vadd.s32 %v346, 1
  %vm352 = vcmp.gt.s32.totalorder %v351, 0
  %v353 = vsel %vm352, %v351, 0
  %v354 = vshrl.u32 %v353, 5
  %v355 = vand.u32 %v353, 31
  %v356 = vsub.s32 32, %v355
  %v357 = vshrl.u32 683565275, %v356
  %v358 = vshll.u32 683565275, %v355
  %v359 = vshrl.u32 2475754826, %v356
  %v360 = vor.u32 %v358, %v359
  %v361 = vshll.u32 2475754826, %v355
  %v362 = vshrl.u32 2131351028, %v356
  %v363 = vor.u32 %v361, %v362
  %v364 = vshll.u32 2131351028, %v355
  %v365 = vshrl.u32 2102212464, %v356
  %v366 = vor.u32 %v364, %v365
  %v367 = vshll.u32 2102212464, %v355
  %v368 = vshrl.u32 920167782, %v356
  %v369 = vor.u32 %v367, %v368
  %v370 = vshll.u32 920167782, %v355
  %v371 = vshrl.u32 1326507024, %v356
  %v372 = vor.u32 %v370, %v371
  %vm373 = vcmp.lt.s32.totalorder %v354, 1
  %vm374 = vcmp.lt.s32.totalorder %v354, 2
  %vm375 = vcmp.lt.s32.totalorder %v354, 3
  %vm376 = vcmp.lt.s32.totalorder %v354, 4
  %v377 = vsel %vm373, %v357, %v360
  %v378 = vsel %vm376, %v366, 2102212464
  %v379 = vsel %vm375, %v363, %v378
  %v380 = vsel %vm374, %v377, %v379
  %v381 = vsel %vm373, %v360, %v363
  %v382 = vsel %vm376, %v369, 920167782
  %v383 = vsel %vm375, %v366, %v382
  %v384 = vsel %vm374, %v381, %v383
  %v385 = vsel %vm373, %v363, %v366
  %v386 = vsel %vm376, %v372, 1326507024
  %v387 = vsel %vm375, %v369, %v386
  %v388 = vsel %vm374, %v385, %v387
  %v389 = vshll.u32 %v349, 8
  %v390 = vmul.u32.u64.compose %v389, %v388
  %v391 = vextract.low.u32 %v390
  %v392 = vextract.high.u32 %v390
  %v393 = vmul.u32.u64.compose %v389, %v384
  %v394 = vextract.low.u32 %v393
  %v395 = vextract.high.u32 %v393
  %v396 = vmul.u32 %v389, %v380
  %v397 = vadd.s32 %v392, %v394
  %vm398 = vc.u32 %v392, %v394
  %v399 = vadd.s32 %v395, 1
  %v400 = vsel %vm398, %v399, %v395
  %v401 = vadd.s32 %v396, %v400
  %v402 = vadd.s32 %v401, 536870912
  %v403 = vshrl.u32 %v402, 30
  %v404 = vshll.u32 %v403, 30
  %v405 = vsub.s32 %v401, %v404
  %vm406 = vcmp.lt.s32.totalorder %v405, 0
  %v407 = vsub.s32 0, %v405
  %v408 = vsel %vm406, %v407, %v405
  %v409 = vclz %v408
  %v410 = vsub.s32 %v409, 2
  %vm411 = vcmp.gt.s32.totalorder 0, %v410
  %v412 = vsel %vm411, 0, %v410
  %v413 = vsub.s32 32, %v412
  %v414 = vshll.u32 %v405, %v412
  %v415 = vshrl.u32 %v397, %v413
  %v416 = vor.u32 %v414, %v415
  %v417 = vsub.s32 4294967266, %v412
  %v418 = vadd.s32 %v417, 127
  %v419 = vshll.u32 %v418, 23
  %v420 = vor.u32 4788187, %v419
  %v421 = vand.u32 2147483647, %v420
  %v423 = vcvt.s32.f32 %v416
  %v424 = vmul.f32 %v423, %v421
  %v425 = vxor.u32 %v424, 2147483648
  %v426 = vsel %vm343, %v425, %v424
  %v427 = vsub.s32 4, %v403
  %v428 = vsel %vm343, %v427, %v403
  %v429 = vsel %vm342, %v129, %v426
  %v430 = vsel %vm342, 0, %v428
  %v431 = vcosq.f32.pop %v429
  %v432 = vsinq.f32.pop %v429
  %vm433 = vweird.f32 %v129
  %v434 = vand.u32 %v430, 3
  %vm435 = vcmp.lt.s32.totalorder %v434, 2
  %vm436 = vcmp.eq.s32.totalorder %v434, 0
  %v437 = vxor.u32 %v432, 2147483648
  %v438 = vsel %vm436, %v431, %v437
  %vm439 = vcmp.eq.s32.totalorder %v434, 2
  %v440 = vxor.u32 %v431, 2147483648
  %v441 = vsel %vm439, %v440, %v432
  %v442 = vsel %vm435, %v438, %v441
  %v443 = vsel %vm433, nan, %v442
  %v444 = vand.u32 2147483647, %v130
  %vm445 = vcmp.le.f32.partialorder %v444, 0.7853982
  %vm446 = vcmp.lt.s32.totalorder %v130, 0
  %v447 = vand.u32 %v130, 2139095040
  %v448 = vshrl.u32 %v447, 23
  %v449 = vsub.s32 %v448, 127
  %v450 = vand.u32 2147483647, %v130
  %v451 = vand.u32 %v450, 8388607
  %v452 = vor.u32 %v451, 8388608
  %v453 = vsub.s32 0, %v452
  %v454 = vadd.s32 %v449, 1
  %vm455 = vcmp.gt.s32.totalorder %v454, 0
  %v456 = vsel %vm455, %v454, 0
  %v457 = vshrl.u32 %v456, 5
  %v458 = vand.u32 %v456, 31
  %v459 = vsub.s32 32, %v458
  %v460 = vshrl.u32 683565275, %v459
  %v461 = vshll.u32 683565275, %v458
  %v462 = vshrl.u32 2475754826, %v459
  %v463 = vor.u32 %v461, %v462
  %v464 = vshll.u32 2475754826, %v458
  %v465 = vshrl.u32 2131351028, %v459
  %v466 = vor.u32 %v464, %v465
  %v467 = vshll.u32 2131351028, %v458
  %v468 = vshrl.u32 2102212464, %v459
  %v469 = vor.u32 %v467, %v468
  %v470 = vshll.u32 2102212464, %v458
  %v471 = vshrl.u32 920167782, %v459
  %v472 = vor.u32 %v470, %v471
  %v473 = vshll.u32 920167782, %v458
  %v474 = vshrl.u32 1326507024, %v459
  %v475 = vor.u32 %v473, %v474
  %vm476 = vcmp.lt.s32.totalorder %v457, 1
  %vm477 = vcmp.lt.s32.totalorder %v457, 2
  %vm478 = vcmp.lt.s32.totalorder %v457, 3
  %vm479 = vcmp.lt.s32.totalorder %v457, 4
  %v480 = vsel %vm476, %v460, %v463
  %v481 = vsel %vm479, %v469, 2102212464
  %v482 = vsel %vm478, %v466, %v481
  %v483 = vsel %vm477, %v480, %v482
  %v484 = vsel %vm476, %v463, %v466
  %v485 = vsel %vm479, %v472, 920167782
  %v486 = vsel %vm478, %v469, %v485
  %v487 = vsel %vm477, %v484, %v486
  %v488 = vsel %vm476, %v466, %v469
  %v489 = vsel %vm479, %v475, 1326507024
  %v490 = vsel %vm478, %v472, %v489
  %v491 = vsel %vm477, %v488, %v490
  %v492 = vshll.u32 %v452, 8
  %v493 = vmul.u32.u64.compose %v492, %v491
  %v494 = vextract.low.u32 %v493
  %v495 = vextract.high.u32 %v493
  %v496 = vmul.u32.u64.compose %v492, %v487
  %v497 = vextract.low.u32 %v496
  %v498 = vextract.high.u32 %v496
  %v499 = vmul.u32 %v492, %v483
  %v500 = vadd.s32 %v495, %v497
  %vm501 = vc.u32 %v495, %v497
  %v502 = vadd.s32 %v498, 1
  %v503 = vsel %vm501, %v502, %v498
  %v504 = vadd.s32 %v499, %v503
  %v505 = vadd.s32 %v504, 536870912
  %v506 = vshrl.u32 %v505, 30
  %v507 = vshll.u32 %v506, 30
  %v508 = vsub.s32 %v504, %v507
  %vm509 = vcmp.lt.s32.totalorder %v508, 0
  %v510 = vsub.s32 0, %v508
  %v511 = vsel %vm509, %v510, %v508
  %v512 = vclz %v511
  %v513 = vsub.s32 %v512, 2
  %vm514 = vcmp.gt.s32.totalorder 0, %v513
  %v515 = vsel %vm514, 0, %v513
  %v516 = vsub.s32 32, %v515
  %v517 = vshll.u32 %v508, %v515
  %v518 = vshrl.u32 %v500, %v516
  %v519 = vor.u32 %v517, %v518
  %v520 = vsub.s32 4294967266, %v515
  %v521 = vadd.s32 %v520, 127
  %v522 = vshll.u32 %v521, 23
  %v523 = vor.u32 4788187, %v522
  %v524 = vand.u32 2147483647, %v523
  %v526 = vcvt.s32.f32 %v519
  %v527 = vmul.f32 %v526, %v524
  %v528 = vxor.u32 %v527, 2147483648
  %v529 = vsel %vm446, %v528, %v527
  %v530 = vsub.s32 4, %v506
  %v531 = vsel %vm446, %v530, %v506
  %v532 = vsel %vm445, %v130, %v529
  %v533 = vsel %vm445, 0, %v531
  %v534 = vcosq.f32.pop %v532
  %v535 = vsinq.f32.pop %v532
  %vm536 = vweird.f32 %v130
  %v537 = vand.u32 %v533, 3
  %vm538 = vcmp.lt.s32.totalorder %v537, 2
  %vm539 = vcmp.eq.s32.totalorder %v537, 0
  %v540 = vxor.u32 %v535, 2147483648
  %v541 = vsel %vm539, %v534, %v540
  %vm542 = vcmp.eq.s32.totalorder %v537, 2
  %v543 = vxor.u32 %v534, 2147483648
  %v544 = vsel %vm542, %v543, %v535
  %v545 = vsel %vm538, %v541, %v544
  %v546 = vsel %vm536, nan, %v545
  %v547 = vand.u32 2147483647, %v131
  %vm548 = vcmp.le.f32.partialorder %v547, 0.7853982
  %vm549 = vcmp.lt.s32.totalorder %v131, 0
  %v550 = vand.u32 %v131, 2139095040
  %v551 = vshrl.u32 %v550, 23
  %v552 = vsub.s32 %v551, 127
  %v553 = vand.u32 2147483647, %v131
  %v554 = vand.u32 %v553, 8388607
  %v555 = vor.u32 %v554, 8388608
  %v556 = vsub.s32 0, %v555
  %v557 = vadd.s32 %v552, 1
  %vm558 = vcmp.gt.s32.totalorder %v557, 0
  %v559 = vsel %vm558, %v557, 0
  %v560 = vshrl.u32 %v559, 5
  %v561 = vand.u32 %v559, 31
  %v562 = vsub.s32 32, %v561
  %v563 = vshrl.u32 683565275, %v562
  %v564 = vshll.u32 683565275, %v561
  %v565 = vshrl.u32 2475754826, %v562
  %v566 = vor.u32 %v564, %v565
  %v567 = vshll.u32 2475754826, %v561
  %v568 = vshrl.u32 2131351028, %v562
  %v569 = vor.u32 %v567, %v568
  %v570 = vshll.u32 2131351028, %v561
  %v571 = vshrl.u32 2102212464, %v562
  %v572 = vor.u32 %v570, %v571
  %v573 = vshll.u32 2102212464, %v561
  %v574 = vshrl.u32 920167782, %v562
  %v575 = vor.u32 %v573, %v574
  %v576 = vshll.u32 920167782, %v561
  %v577 = vshrl.u32 1326507024, %v562
  %v578 = vor.u32 %v576, %v577
  %vm579 = vcmp.lt.s32.totalorder %v560, 1
  %vm580 = vcmp.lt.s32.totalorder %v560, 2
  %vm581 = vcmp.lt.s32.totalorder %v560, 3
  %vm582 = vcmp.lt.s32.totalorder %v560, 4
  %v583 = vsel %vm579, %v563, %v566
  %v584 = vsel %vm582, %v572, 2102212464
  %v585 = vsel %vm581, %v569, %v584
  %v586 = vsel %vm580, %v583, %v585
  %v587 = vsel %vm579, %v566, %v569
  %v588 = vsel %vm582, %v575, 920167782
  %v589 = vsel %vm581, %v572, %v588
  %v590 = vsel %vm580, %v587, %v589
  %v591 = vsel %vm579, %v569, %v572
  %v592 = vsel %vm582, %v578, 1326507024
  %v593 = vsel %vm581, %v575, %v592
  %v594 = vsel %vm580, %v591, %v593
  %v595 = vshll.u32 %v555, 8
  %v596 = vmul.u32.u64.compose %v595, %v594
  %v597 = vextract.low.u32 %v596
  %v598 = vextract.high.u32 %v596
  %v599 = vmul.u32.u64.compose %v595, %v590
  %v600 = vextract.low.u32 %v599
  %v601 = vextract.high.u32 %v599
  %v602 = vmul.u32 %v595, %v586
  %v603 = vadd.s32 %v598, %v600
  %vm604 = vc.u32 %v598, %v600
  %v605 = vadd.s32 %v601, 1
  %v606 = vsel %vm604, %v605, %v601
  %v607 = vadd.s32 %v602, %v606
  %v608 = vadd.s32 %v607, 536870912
  %v609 = vshrl.u32 %v608, 30
  %v610 = vshll.u32 %v609, 30
  %v611 = vsub.s32 %v607, %v610
  %vm612 = vcmp.lt.s32.totalorder %v611, 0
  %v613 = vsub.s32 0, %v611
  %v614 = vsel %vm612, %v613, %v611
  %v615 = vclz %v614
  %v616 = vsub.s32 %v615, 2
  %vm617 = vcmp.gt.s32.totalorder 0, %v616
  %v618 = vsel %vm617, 0, %v616
  %v619 = vsub.s32 32, %v618
  %v620 = vshll.u32 %v611, %v618
  %v621 = vshrl.u32 %v603, %v619
  %v622 = vor.u32 %v620, %v621
  %v623 = vsub.s32 4294967266, %v618
  %v624 = vadd.s32 %v623, 127
  %v625 = vshll.u32 %v624, 23
  %v626 = vor.u32 4788187, %v625
  %v627 = vand.u32 2147483647, %v626
  %v629 = vcvt.s32.f32 %v622
  %v630 = vmul.f32 %v629, %v627
  %v631 = vxor.u32 %v630, 2147483648
  %v632 = vsel %vm549, %v631, %v630
  %v633 = vsub.s32 4, %v609
  %v634 = vsel %vm549, %v633, %v609
  %v635 = vsel %vm548, %v131, %v632
  %v636 = vsel %vm548, 0, %v634
  %v637 = vcosq.f32.pop %v635
  %v638 = vsinq.f32.pop %v635
  %vm639 = vweird.f32 %v131
  %v640 = vand.u32 %v636, 3
  %vm641 = vcmp.lt.s32.totalorder %v640, 2
  %vm642 = vcmp.eq.s32.totalorder %v640, 0
  %v643 = vxor.u32 %v638, 2147483648
  %v644 = vsel %vm642, %v637, %v643
  %vm645 = vcmp.eq.s32.totalorder %v640, 2
  %v646 = vxor.u32 %v637, 2147483648
  %v647 = vsel %vm645, %v646, %v638
  %v648 = vsel %vm641, %v644, %v647
  %v649 = vsel %vm639, nan, %v648
  %v650 = vand.u32 2147483647, %v132
  %vm651 = vcmp.le.f32.partialorder %v650, 0.7853982
  %vm652 = vcmp.lt.s32.totalorder %v132, 0
  %v653 = vand.u32 %v132, 2139095040
  %v654 = vshrl.u32 %v653, 23
  %v655 = vsub.s32 %v654, 127
  %v656 = vand.u32 2147483647, %v132
  %v657 = vand.u32 %v656, 8388607
  %v658 = vor.u32 %v657, 8388608
  %v659 = vsub.s32 0, %v658
  %v660 = vadd.s32 %v655, 1
  %vm661 = vcmp.gt.s32.totalorder %v660, 0
  %v662 = vsel %vm661, %v660, 0
  %v663 = vshrl.u32 %v662, 5
  %v664 = vand.u32 %v662, 31
  %v665 = vsub.s32 32, %v664
  %v666 = vshrl.u32 683565275, %v665
  %v667 = vshll.u32 683565275, %v664
  %v668 = vshrl.u32 2475754826, %v665
  %v669 = vor.u32 %v667, %v668
  %v670 = vshll.u32 2475754826, %v664
  %v671 = vshrl.u32 2131351028, %v665
  %v672 = vor.u32 %v670, %v671
  %v673 = vshll.u32 2131351028, %v664
  %v674 = vshrl.u32 2102212464, %v665
  %v675 = vor.u32 %v673, %v674
  %v676 = vshll.u32 2102212464, %v664
  %v677 = vshrl.u32 920167782, %v665
  %v678 = vor.u32 %v676, %v677
  %v679 = vshll.u32 920167782, %v664
  %v680 = vshrl.u32 1326507024, %v665
  %v681 = vor.u32 %v679, %v680
  %vm682 = vcmp.lt.s32.totalorder %v663, 1
  %vm683 = vcmp.lt.s32.totalorder %v663, 2
  %vm684 = vcmp.lt.s32.totalorder %v663, 3
  %vm685 = vcmp.lt.s32.totalorder %v663, 4
  %v686 = vsel %vm682, %v666, %v669
  %v687 = vsel %vm685, %v675, 2102212464
  %v688 = vsel %vm684, %v672, %v687
  %v689 = vsel %vm683, %v686, %v688
  %v690 = vsel %vm682, %v669, %v672
  %v691 = vsel %vm685, %v678, 920167782
  %v692 = vsel %vm684, %v675, %v691
  %v693 = vsel %vm683, %v690, %v692
  %v694 = vsel %vm682, %v672, %v675
  %v695 = vsel %vm685, %v681, 1326507024
  %v696 = vsel %vm684, %v678, %v695
  %v697 = vsel %vm683, %v694, %v696
  %v698 = vshll.u32 %v658, 8
  %v699 = vmul.u32.u64.compose %v698, %v697
  %v700 = vextract.low.u32 %v699
  %v701 = vextract.high.u32 %v699
  %v702 = vmul.u32.u64.compose %v698, %v693
  %v703 = vextract.low.u32 %v702
  %v704 = vextract.high.u32 %v702
  %v705 = vmul.u32 %v698, %v689
  %v706 = vadd.s32 %v701, %v703
  %vm707 = vc.u32 %v701, %v703
  %v708 = vadd.s32 %v704, 1
  %v709 = vsel %vm707, %v708, %v704
  %v710 = vadd.s32 %v705, %v709
  %v711 = vadd.s32 %v710, 536870912
  %v712 = vshrl.u32 %v711, 30
  %v713 = vshll.u32 %v712, 30
  %v714 = vsub.s32 %v710, %v713
  %vm715 = vcmp.lt.s32.totalorder %v714, 0
  %v716 = vsub.s32 0, %v714
  %v717 = vsel %vm715, %v716, %v714
  %v718 = vclz %v717
  %v719 = vsub.s32 %v718, 2
  %vm720 = vcmp.gt.s32.totalorder 0, %v719
  %v721 = vsel %vm720, 0, %v719
  %v722 = vsub.s32 32, %v721
  %v723 = vshll.u32 %v714, %v721
  %v724 = vshrl.u32 %v706, %v722
  %v725 = vor.u32 %v723, %v724
  %v726 = vsub.s32 4294967266, %v721
  %v727 = vadd.s32 %v726, 127
  %v728 = vshll.u32 %v727, 23
  %v729 = vor.u32 4788187, %v728
  %v730 = vand.u32 2147483647, %v729
  %v732 = vcvt.s32.f32 %v725
  %v733 = vmul.f32 %v732, %v730
  %v734 = vxor.u32 %v733, 2147483648
  %v735 = vsel %vm652, %v734, %v733
  %v736 = vsub.s32 4, %v712
  %v737 = vsel %vm652, %v736, %v712
  %v738 = vsel %vm651, %v132, %v735
  %v739 = vsel %vm651, 0, %v737
  %v740 = vcosq.f32.pop %v738
  %v741 = vsinq.f32.pop %v738
  %vm742 = vweird.f32 %v132
  %v743 = vand.u32 %v739, 3
  %vm744 = vcmp.lt.s32.totalorder %v743, 2
  %vm745 = vcmp.eq.s32.totalorder %v743, 0
  %v746 = vxor.u32 %v741, 2147483648
  %v747 = vsel %vm745, %v740, %v746
  %vm748 = vcmp.eq.s32.totalorder %v743, 2
  %v749 = vxor.u32 %v740, 2147483648
  %v750 = vsel %vm748, %v749, %v741
  %v751 = vsel %vm744, %v747, %v750
  %v752 = vsel %vm742, nan, %v751
  %v753 = vand.u32 2147483647, %v133
  %vm754 = vcmp.le.f32.partialorder %v753, 0.7853982
  %vm755 = vcmp.lt.s32.totalorder %v133, 0
  %v756 = vand.u32 %v133, 2139095040
  %v757 = vshrl.u32 %v756, 23
  %v758 = vsub.s32 %v757, 127
  %v759 = vand.u32 2147483647, %v133
  %v760 = vand.u32 %v759, 8388607
  %v761 = vor.u32 %v760, 8388608
  %v762 = vsub.s32 0, %v761
  %v763 = vadd.s32 %v758, 1
  %vm764 = vcmp.gt.s32.totalorder %v763, 0
  %v765 = vsel %vm764, %v763, 0
  %v766 = vshrl.u32 %v765, 5
  %v767 = vand.u32 %v765, 31
  %v768 = vsub.s32 32, %v767
  %v769 = vshrl.u32 683565275, %v768
  %v770 = vshll.u32 683565275, %v767
  %v771 = vshrl.u32 2475754826, %v768
  %v772 = vor.u32 %v770, %v771
  %v773 = vshll.u32 2475754826, %v767
  %v774 = vshrl.u32 2131351028, %v768
  %v775 = vor.u32 %v773, %v774
  %v776 = vshll.u32 2131351028, %v767
  %v777 = vshrl.u32 2102212464, %v768
  %v778 = vor.u32 %v776, %v777
  %v779 = vshll.u32 2102212464, %v767
  %v780 = vshrl.u32 920167782, %v768
  %v781 = vor.u32 %v779, %v780
  %v782 = vshll.u32 920167782, %v767
  %v783 = vshrl.u32 1326507024, %v768
  %v784 = vor.u32 %v782, %v783
  %vm785 = vcmp.lt.s32.totalorder %v766, 1
  %vm786 = vcmp.lt.s32.totalorder %v766, 2
  %vm787 = vcmp.lt.s32.totalorder %v766, 3
  %vm788 = vcmp.lt.s32.totalorder %v766, 4
  %v789 = vsel %vm785, %v769, %v772
  %v790 = vsel %vm788, %v778, 2102212464
  %v791 = vsel %vm787, %v775, %v790
  %v792 = vsel %vm786, %v789, %v791
  %v793 = vsel %vm785, %v772, %v775
  %v794 = vsel %vm788, %v781, 920167782
  %v795 = vsel %vm787, %v778, %v794
  %v796 = vsel %vm786, %v793, %v795
  %v797 = vsel %vm785, %v775, %v778
  %v798 = vsel %vm788, %v784, 1326507024
  %v799 = vsel %vm787, %v781, %v798
  %v800 = vsel %vm786, %v797, %v799
  %v801 = vshll.u32 %v761, 8
  %v802 = vmul.u32.u64.compose %v801, %v800
  %v803 = vextract.low.u32 %v802
  %v804 = vextract.high.u32 %v802
  %v805 = vmul.u32.u64.compose %v801, %v796
  %v806 = vextract.low.u32 %v805
  %v807 = vextract.high.u32 %v805
  %v808 = vmul.u32 %v801, %v792
  %v809 = vadd.s32 %v804, %v806
  %vm810 = vc.u32 %v804, %v806
  %v811 = vadd.s32 %v807, 1
  %v812 = vsel %vm810, %v811, %v807
  %v813 = vadd.s32 %v808, %v812
  %v814 = vadd.s32 %v813, 536870912
  %v815 = vshrl.u32 %v814, 30
  %v816 = vshll.u32 %v815, 30
  %v817 = vsub.s32 %v813, %v816
  %vm818 = vcmp.lt.s32.totalorder %v817, 0
  %v819 = vsub.s32 0, %v817
  %v820 = vsel %vm818, %v819, %v817
  %v821 = vclz %v820
  %v822 = vsub.s32 %v821, 2
  %vm823 = vcmp.gt.s32.totalorder 0, %v822
  %v824 = vsel %vm823, 0, %v822
  %v825 = vsub.s32 32, %v824
  %v826 = vshll.u32 %v817, %v824
  %v827 = vshrl.u32 %v809, %v825
  %v828 = vor.u32 %v826, %v827
  %v829 = vsub.s32 4294967266, %v824
  %v830 = vadd.s32 %v829, 127
  %v831 = vshll.u32 %v830, 23
  %v832 = vor.u32 4788187, %v831
  %v833 = vand.u32 2147483647, %v832
  %v835 = vcvt.s32.f32 %v828
  %v836 = vmul.f32 %v835, %v833
  %v837 = vxor.u32 %v836, 2147483648
  %v838 = vsel %vm755, %v837, %v836
  %v839 = vsub.s32 4, %v815
  %v840 = vsel %vm755, %v839, %v815
  %v841 = vsel %vm754, %v133, %v838
  %v842 = vsel %vm754, 0, %v840
  %v843 = vcosq.f32.pop %v841
  %v844 = vsinq.f32.pop %v841
  %vm845 = vweird.f32 %v133
  %v846 = vand.u32 %v842, 3
  %vm847 = vcmp.lt.s32.totalorder %v846, 2
  %vm848 = vcmp.eq.s32.totalorder %v846, 0
  %v849 = vxor.u32 %v844, 2147483648
  %v850 = vsel %vm848, %v843, %v849
  %vm851 = vcmp.eq.s32.totalorder %v846, 2
  %v852 = vxor.u32 %v843, 2147483648
  %v853 = vsel %vm851, %v852, %v844
  %v854 = vsel %vm847, %v850, %v853
  %v855 = vsel %vm845, nan, %v854
  %v856 = vand.u32 2147483647, %v134
  %vm857 = vcmp.le.f32.partialorder %v856, 0.7853982
  %vm858 = vcmp.lt.s32.totalorder %v134, 0
  %v859 = vand.u32 %v134, 2139095040
  %v860 = vshrl.u32 %v859, 23
  %v861 = vsub.s32 %v860, 127
  %v862 = vand.u32 2147483647, %v134
  %v863 = vand.u32 %v862, 8388607
  %v864 = vor.u32 %v863, 8388608
  %v865 = vsub.s32 0, %v864
  %v866 = vadd.s32 %v861, 1
  %vm867 = vcmp.gt.s32.totalorder %v866, 0
  %v868 = vsel %vm867, %v866, 0
  %v869 = vshrl.u32 %v868, 5
  %v870 = vand.u32 %v868, 31
  %v871 = vsub.s32 32, %v870
  %v872 = vshrl.u32 683565275, %v871
  %v873 = vshll.u32 683565275, %v870
  %v874 = vshrl.u32 2475754826, %v871
  %v875 = vor.u32 %v873, %v874
  %v876 = vshll.u32 2475754826, %v870
  %v877 = vshrl.u32 2131351028, %v871
  %v878 = vor.u32 %v876, %v877
  %v879 = vshll.u32 2131351028, %v870
  %v880 = vshrl.u32 2102212464, %v871
  %v881 = vor.u32 %v879, %v880
  %v882 = vshll.u32 2102212464, %v870
  %v883 = vshrl.u32 920167782, %v871
  %v884 = vor.u32 %v882, %v883
  %v885 = vshll.u32 920167782, %v870
  %v886 = vshrl.u32 1326507024, %v871
  %v887 = vor.u32 %v885, %v886
  %vm888 = vcmp.lt.s32.totalorder %v869, 1
  %vm889 = vcmp.lt.s32.totalorder %v869, 2
  %vm890 = vcmp.lt.s32.totalorder %v869, 3
  %vm891 = vcmp.lt.s32.totalorder %v869, 4
  %v892 = vsel %vm888, %v872, %v875
  %v893 = vsel %vm891, %v881, 2102212464
  %v894 = vsel %vm890, %v878, %v893
  %v895 = vsel %vm889, %v892, %v894
  %v896 = vsel %vm888, %v875, %v878
  %v897 = vsel %vm891, %v884, 920167782
  %v898 = vsel %vm890, %v881, %v897
  %v899 = vsel %vm889, %v896, %v898
  %v900 = vsel %vm888, %v878, %v881
  %v901 = vsel %vm891, %v887, 1326507024
  %v902 = vsel %vm890, %v884, %v901
  %v903 = vsel %vm889, %v900, %v902
  %v904 = vshll.u32 %v864, 8
  %v905 = vmul.u32.u64.compose %v904, %v903
  %v906 = vextract.low.u32 %v905
  %v907 = vextract.high.u32 %v905
  %v908 = vmul.u32.u64.compose %v904, %v899
  %v909 = vextract.low.u32 %v908
  %v910 = vextract.high.u32 %v908
  %v911 = vmul.u32 %v904, %v895
  %v912 = vadd.s32 %v907, %v909
  %vm913 = vc.u32 %v907, %v909
  %v914 = vadd.s32 %v910, 1
  %v915 = vsel %vm913, %v914, %v910
  %v916 = vadd.s32 %v911, %v915
  %v917 = vadd.s32 %v916, 536870912
  %v918 = vshrl.u32 %v917, 30
  %v919 = vshll.u32 %v918, 30
  %v920 = vsub.s32 %v916, %v919
  %vm921 = vcmp.lt.s32.totalorder %v920, 0
  %v922 = vsub.s32 0, %v920
  %v923 = vsel %vm921, %v922, %v920
  %v924 = vclz %v923
  %v925 = vsub.s32 %v924, 2
  %vm926 = vcmp.gt.s32.totalorder 0, %v925
  %v927 = vsel %vm926, 0, %v925
  %v928 = vsub.s32 32, %v927
  %v929 = vshll.u32 %v920, %v927
  %v930 = vshrl.u32 %v912, %v928
  %v931 = vor.u32 %v929, %v930
  %v932 = vsub.s32 4294967266, %v927
  %v933 = vadd.s32 %v932, 127
  %v934 = vshll.u32 %v933, 23
  %v935 = vor.u32 4788187, %v934
  %v936 = vand.u32 2147483647, %v935
  %v938 = vcvt.s32.f32 %v931
  %v939 = vmul.f32 %v938, %v936
  %v940 = vxor.u32 %v939, 2147483648
  %v941 = vsel %vm858, %v940, %v939
  %v942 = vsub.s32 4, %v918
  %v943 = vsel %vm858, %v942, %v918
  %v944 = vsel %vm857, %v134, %v941
  %v945 = vsel %vm857, 0, %v943
  %v946 = vcosq.f32.pop %v944
  %v947 = vsinq.f32.pop %v944
  %vm948 = vweird.f32 %v134
  %v949 = vand.u32 %v945, 3
  %vm950 = vcmp.lt.s32.totalorder %v949, 2
  %vm951 = vcmp.eq.s32.totalorder %v949, 0
  %v952 = vxor.u32 %v947, 2147483648
  %v953 = vsel %vm951, %v946, %v952
  %vm954 = vcmp.eq.s32.totalorder %v949, 2
  %v955 = vxor.u32 %v946, 2147483648
  %v956 = vsel %vm954, %v955, %v947
  %v957 = vsel %vm950, %v953, %v956
  %v958 = vsel %vm948, nan, %v957
  %v959 = vld [vmem:[%s0] sm:$0xf]
  %v960 = vld [vmem:[%s0 + $0x4] sm:$0xf]
  %v961 = vld [vmem:[%s0 + $0x8] sm:$0xf]
  %v962 = vld [vmem:[%s0 + $0xc] sm:$0xf]
  %v963 = vld [vmem:[%s0 + $0x10] sm:$0xf]
  %v964 = vld [vmem:[%s0 + $0x14] sm:$0xf]
  %v965 = vld [vmem:[%s0 + $0x18] sm:$0xf]
  %v966 = vld [vmem:[%s0 + $0x1c] sm:$0xf]
  %v967 = vunpack.c.l.bf16 %v959
  %v968 = vunpack.c.l.bf16 %v960
  %v969 = vunpack.c.l.bf16 %v961
  %v970 = vunpack.c.l.bf16 %v962
  %v971 = vunpack.c.l.bf16 %v963
  %v972 = vunpack.c.l.bf16 %v964
  %v973 = vunpack.c.l.bf16 %v965
  %v974 = vunpack.c.l.bf16 %v966
  %v975 = vld [vmem:[%s3] sm:$0xf]
  %v976 = vld [vmem:[%s3 + $0x4] sm:$0xf]
  %v977 = vld [vmem:[%s3 + $0x8] sm:$0xf]
  %v978 = vld [vmem:[%s3 + $0xc] sm:$0xf]
  %v979 = vld [vmem:[%s3 + $0x10] sm:$0xf]
  %v980 = vld [vmem:[%s3 + $0x14] sm:$0xf]
  %v981 = vld [vmem:[%s3 + $0x18] sm:$0xf]
  %v982 = vld [vmem:[%s3 + $0x1c] sm:$0xf]
  %v983 = vunpack.c.l.bf16 %v975
  %v984 = vunpack.c.l.bf16 %v976
  %v985 = vunpack.c.l.bf16 %v977
  %v986 = vunpack.c.l.bf16 %v978
  %v987 = vunpack.c.l.bf16 %v979
  %v988 = vunpack.c.l.bf16 %v980
  %v989 = vunpack.c.l.bf16 %v981
  %v990 = vunpack.c.l.bf16 %v982
  %999 = vrot.lane.b32.xlu0 %v237, 32
  %v1000 = vpop.permute.xlu0 %999
  %1001 = vrot.lane.b32.xlu0 %v340, 32
  %v1002 = vpop.permute.xlu0 %1001
  %1003 = vrot.lane.b32.xlu0 %v443, 32
  %v1004 = vpop.permute.xlu0 %1003
  %1005 = vrot.lane.b32.xlu0 %v546, 32
  %v1006 = vpop.permute.xlu0 %1005
  %1007 = vrot.lane.b32.xlu0 %v649, 32
  %v1008 = vpop.permute.xlu0 %1007
  %1009 = vrot.lane.b32.xlu0 %v752, 32
  %v1010 = vpop.permute.xlu0 %1009
  %1011 = vrot.lane.b32.xlu0 %v855, 32
  %v1012 = vpop.permute.xlu0 %1011
  %1013 = vrot.lane.b32.xlu0 %v958, 32
  %v1014 = vpop.permute.xlu0 %1013
  %1031 = vrot.lane.b32.xlu0 %v983, 48
  %v1032 = vpop.permute.xlu0 %1031
  %1033 = vrot.lane.b32.xlu0 %v984, 48
  %v1034 = vpop.permute.xlu0 %1033
  %1035 = vrot.lane.b32.xlu0 %v985, 48
  %v1036 = vpop.permute.xlu0 %1035
  %1037 = vrot.lane.b32.xlu0 %v986, 48
  %v1038 = vpop.permute.xlu0 %1037
  %1039 = vrot.lane.b32.xlu0 %v987, 48
  %v1040 = vpop.permute.xlu0 %1039
  %1041 = vrot.lane.b32.xlu0 %v988, 48
  %v1042 = vpop.permute.xlu0 %1041
  %1043 = vrot.lane.b32.xlu0 %v989, 48
  %v1044 = vpop.permute.xlu0 %1043
  %1045 = vrot.lane.b32.xlu0 %v990, 48
  %v1046 = vpop.permute.xlu0 %1045
  %vm1055 = vcmask 261120
  %v1056 = vsel %vm1055, %v967, %v1000
  %v1057 = vsel %vm1055, %v968, %v1002
  %v1058 = vsel %vm1055, %v969, %v1004
  %v1059 = vsel %vm1055, %v970, %v1006
  %v1060 = vsel %vm1055, %v971, %v1008
  %v1061 = vsel %vm1055, %v972, %v1010
  %v1062 = vsel %vm1055, %v973, %v1012
  %v1063 = vsel %vm1055, %v974, %v1014
  %vm1064 = vcmask 392192
  %v1065 = vsel %vm1064, %v1056, %v1032
  %v1066 = vsel %vm1064, %v1057, %v1034
  %v1067 = vsel %vm1064, %v1058, %v1036
  %v1068 = vsel %vm1064, %v1059, %v1038
  %v1069 = vsel %vm1064, %v1060, %v1040
  %v1070 = vsel %vm1064, %v1061, %v1042
  %v1071 = vsel %vm1064, %v1062, %v1044
  %v1072 = vsel %vm1064, %v1063, %v1046
  %v1073 = vpack.c.bf16 %v1066, %v1065
  %v1074 = vpack.c.bf16 %v1068, %v1067
  %v1075 = vpack.c.bf16 %v1070, %v1069
  %v1076 = vpack.c.bf16 %v1072, %v1071
  %v1077 = vld [vmem:[%s7] sm:$0xf]
  %v1078 = vld [vmem:[%s7 + $0x4] sm:$0xf]
  %v1079 = vld [vmem:[%s7 + $0x8] sm:$0xf]
  %v1080 = vld [vmem:[%s7 + $0xc] sm:$0xf]
  %v1081 = vld [vmem:[%s7 + $0x10] sm:$0xf]
  %v1082 = vld [vmem:[%s7 + $0x14] sm:$0xf]
  %v1083 = vld [vmem:[%s7 + $0x18] sm:$0xf]
  %v1084 = vld [vmem:[%s7 + $0x1c] sm:$0xf]
  %v1085 = vld [vmem:[%s7 + $0x20] sm:$0xf]
  %v1086 = vld [vmem:[%s7 + $0x24] sm:$0xf]
  %v1087 = vld [vmem:[%s8] sm:$0x1]
  %v1089 = vlaneseq
  %v1090 = vshrl.u32 %v1089, 7
  %v1091 = vsub.s32 0, %v1090
  %v1092 = vrot.slane %v1087, %v1091
  %v1104 = vunpack.c.l.b16 %v1077
  %v1105 = vunpack.c.l.b16 %v1078
  %v1106 = vunpack.c.l.b16 %v1079
  %v1107 = vunpack.c.l.b16 %v1080
  %v1108 = vunpack.c.l.b16 %v1081
  %v1109 = vunpack.c.l.b16 %v1082
  %v1110 = vunpack.c.l.b16 %v1083
  %v1111 = vunpack.c.l.b16 %v1084
  %v1112 = vunpack.c.l.b16 %v1085
  %v1113 = vunpack.c.l.b16 %v1086
  %v1114 = vpack.c.b16 %v1105, %v1104
  %v1115 = vpack.c.b16 %v1107, %v1106
  %v1116 = vpack.c.b16 %v1109, %v1108
  %v1117 = vpack.c.b16 %v1111, %v1110
  %v1118 = vpack.c.b16 %v1113, %v1112
  %vm1124 = vcmask 654336
  %v1126 = vsel %vm1124, %v1073, 0
  %v1129 = vsel %vm1124, %v1074, 0
  %v1132 = vsel %vm1124, %v1075, 0
  %v1135 = vsel %vm1124, %v1076, 0
  %1137 = vmatprep.subr.bf16.mxu0 0
  %1138 = vmatpush1.bf16.msra.mxu0 0
  %1139 = vmatprep.subr.bf16.mxu0 0
  %1140 = vmatpush1.bf16.msra.mxu0 0
  %1141 = vmatprep.subr.bf16.mxu0 0
  %1142 = vmatpush1.bf16.msra.mxu0 0
  %1143 = vmatprep.subr.bf16.mxu0 0
  %1144 = vmatpush1.bf16.msra.mxu0 %v1118
  %1145 = vmatprep.subr.bf16.mxu0 0
  %1146 = vmatpush1.bf16.msra.mxu0 %v1117
  %1147 = vmatprep.subr.bf16.mxu0 0
  %1148 = vmatpush1.bf16.msra.mxu0 %v1116
  %1149 = vmatprep.subr.bf16.mxu0 0
  %1150 = vmatpush1.bf16.msra.mxu0 %v1115
  %1151 = vmatprep.subr.bf16.mxu0 0
  %1152 = vmatpush1.bf16.msra.mxu0 %v1114
  %1153 = vmatprep.subr.bf16.mxu0 0
  %1154 = vmatpush2.bf16.msra.mxu0 0
  %1155 = vmatprep.subr.bf16.mxu0 0
  %1156 = vmatpush2.bf16.msra.mxu0 0
  %1157 = vmatprep.subr.bf16.mxu0 0
  %1158 = vmatpush2.bf16.msra.mxu0 0
  %1159 = vmatprep.subr.bf16.mxu0 0
  %1160 = vmatpush2.bf16.msra.mxu0 0
  %1161 = vmatprep.subr.bf16.mxu0 0
  %1162 = vmatpush2.bf16.msra.mxu0 0
  %1163 = vmatprep.subr.bf16.mxu0 0
  %1164 = vmatpush2.bf16.msra.mxu0 0
  %1165 = vmatprep.subr.bf16.mxu0 0
  %1166 = vmatpush2.bf16.msra.mxu0 0
  %1167 = vmatprep.subr.bf16.mxu0 0
  %1168 = vmatpush2.bf16.msra.mxu0 0
  %1169 = vmatprep.mubr.bf16.mxu0 0
  %1170 = vmatmul.mubr.bf16.gmra.mxu0 %v1126
  %v1171 = vpop.f32.mrf.mxu0
  %v1172 = vadd.f32 %v1092, %v1171
  %v1173 = vpop.f32.mrf.mxu0
  %v1174 = vpop.f32.mrf.mxu0
  %v1175 = vadd.f32 %v1092, %v1174
  %v1176 = vpop.f32.mrf.mxu0
  %1177 = vmatprep.mubr.bf16.mxu0 0
  %1178 = vmatmul.mubr.bf16.gmra.mxu0 %v1129
  %v1179 = vpop.f32.mrf.mxu0
  %v1180 = vadd.f32 %v1092, %v1179
  %v1181 = vpop.f32.mrf.mxu0
  %v1182 = vpop.f32.mrf.mxu0
  %v1183 = vadd.f32 %v1092, %v1182
  %v1184 = vpop.f32.mrf.mxu0
  %1185 = vmatprep.mubr.bf16.mxu0 0
  %1186 = vmatmul.mubr.bf16.gmra.mxu0 %v1132
  %v1187 = vpop.f32.mrf.mxu0
  %v1188 = vadd.f32 %v1092, %v1187
  %v1189 = vpop.f32.mrf.mxu0
  %v1190 = vpop.f32.mrf.mxu0
  %v1191 = vadd.f32 %v1092, %v1190
  %v1192 = vpop.f32.mrf.mxu0
  %1193 = vmatprep.mubr.bf16.mxu0 0
  %1194 = vmatmul.mubr.bf16.gmra.mxu0 %v1135
  %v1195 = vpop.f32.mrf.mxu0
  %v1196 = vadd.f32 %v1092, %v1195
  %v1197 = vpop.f32.mrf.mxu0
  %v1198 = vpop.f32.mrf.mxu0
  %v1199 = vadd.f32 %v1092, %v1198
  %v1200 = vpop.f32.mrf.mxu0
  %1201 = vdwg.mxu0
  %v1202 = vtanh.pop %v1172
  %v1203 = vtanh.pop %v1175
  %v1204 = vtanh.pop %v1180
  %v1205 = vtanh.pop %v1183
  %v1206 = vtanh.pop %v1188
  %v1207 = vtanh.pop %v1191
  %v1208 = vtanh.pop %v1196
  %v1209 = vtanh.pop %v1199
  %1210 = vst.msk [vmem:[%s11] sm:$0xff] %vm1055, %v1202
  %1211 = vst.msk [vmem:[%s11 + $0x8] sm:$0xff] %vm1055, %v1203
  %1212 = vst.msk [vmem:[%s11 + $0x10] sm:$0xff] %vm1055, %v1204
  %1213 = vst.msk [vmem:[%s11 + $0x18] sm:$0xff] %vm1055, %v1205
  %1214 = vst.msk [vmem:[%s11 + $0x20] sm:$0xff] %vm1055, %v1206
  %1215 = vst.msk [vmem:[%s11 + $0x28] sm:$0xff] %vm1055, %v1207
  %1216 = vst.msk [vmem:[%s11 + $0x30] sm:$0xff] %vm1055, %v1208
  %1217 = vst.msk [vmem:[%s11 + $0x38] sm:$0xff] %vm1055, %v1209
  %v1218 = vld [vmem:[%s4] sm:$0xf]
  %v1219 = vld [vmem:[%s4 + $0x4] sm:$0xf]
  %v1220 = vld [vmem:[%s4 + $0x8] sm:$0xf]
  %v1221 = vld [vmem:[%s4 + $0xc] sm:$0xf]
  %v1222 = vld [vmem:[%s4 + $0x10] sm:$0xf]
  %v1223 = vld [vmem:[%s4 + $0x14] sm:$0xf]
  %v1224 = vld [vmem:[%s4 + $0x18] sm:$0xf]
  %v1225 = vld [vmem:[%s4 + $0x1c] sm:$0xf]
  %v1226 = vld [vmem:[%s9] sm:$0xf]
  %v1227 = vld [vmem:[%s9 + $0x4] sm:$0xf]
  %v1228 = vld [vmem:[%s9 + $0x8] sm:$0xf]
  %v1237 = vunpack.c.l.b16 %v1218
  %v1238 = vunpack.c.l.b16 %v1219
  %v1239 = vunpack.c.l.b16 %v1220
  %v1240 = vunpack.c.l.b16 %v1221
  %v1241 = vunpack.c.l.b16 %v1222
  %v1242 = vunpack.c.l.b16 %v1223
  %v1243 = vunpack.c.l.b16 %v1224
  %v1244 = vunpack.c.l.b16 %v1225
  %v1245 = vpack.c.b16 %v1238, %v1237
  %v1246 = vpack.c.b16 %v1240, %v1239
  %v1247 = vpack.c.b16 %v1242, %v1241
  %v1248 = vpack.c.b16 %v1244, %v1243
  %v1252 = vunpack.c.l.b16 %v1226
  %v1253 = vunpack.c.l.b16 %v1227
  %v1254 = vunpack.c.l.b16 %v1228
  %v1255 = vpack.c.b16 %v1253, %v1252
  %v1256 = vpack.c.b16 %v1254, %v1254
  %vm1258 = vcmask 195584
  %v1260 = vsel %vm1258, %v1245, 0
  %v1263 = vsel %vm1258, %v1246, 0
  %v1266 = vsel %vm1258, %v1247, 0
  %v1269 = vsel %vm1258, %v1248, 0
  %vm1271 = vcmask 1043456
  %v1273 = vsel %vm1271, %v1256, 0
  %1275 = vmatprep.subr.bf16.mxu0 0
  %1276 = vmatpush1.bf16.msra.mxu0 0
  %1277 = vmatprep.subr.bf16.mxu0 0
  %1278 = vmatpush1.bf16.msra.mxu0 0
  %1279 = vmatprep.subr.bf16.mxu0 0
  %1280 = vmatpush1.bf16.msra.mxu0 0
  %1281 = vmatprep.subr.bf16.mxu0 0
  %1282 = vmatpush1.bf16.msra.mxu0 0
  %1283 = vmatprep.subr.bf16.mxu0 0
  %1284 = vmatpush1.bf16.msra.mxu0 0
  %1285 = vmatprep.subr.bf16.mxu0 0
  %1286 = vmatpush1.bf16.msra.mxu0 0
  %1287 = vmatprep.subr.bf16.mxu0 0
  %1288 = vmatpush1.bf16.msra.mxu0 %v1273
  %1289 = vmatprep.subr.bf16.mxu0 0
  %1290 = vmatpush1.bf16.msra.mxu0 %v1255
  %1291 = vmatprep.subr.bf16.mxu0 0
  %1292 = vmatpush2.bf16.msra.mxu0 0
  %1293 = vmatprep.subr.bf16.mxu0 0
  %1294 = vmatpush2.bf16.msra.mxu0 0
  %1295 = vmatprep.subr.bf16.mxu0 0
  %1296 = vmatpush2.bf16.msra.mxu0 0
  %1297 = vmatprep.subr.bf16.mxu0 0
  %1298 = vmatpush2.bf16.msra.mxu0 0
  %1299 = vmatprep.subr.bf16.mxu0 0
  %1300 = vmatpush2.bf16.msra.mxu0 0
  %1301 = vmatprep.subr.bf16.mxu0 0
  %1302 = vmatpush2.bf16.msra.mxu0 0
  %1303 = vmatprep.subr.bf16.mxu0 0
  %1304 = vmatpush2.bf16.msra.mxu0 0
  %1305 = vmatprep.subr.bf16.mxu0 0
  %1306 = vmatpush2.bf16.msra.mxu0 0
  %1307 = vmatprep.mubr.bf16.mxu0 0
  %1308 = vmatmul.mubr.bf16.gmra.mxu0 %v1260
  %v1309 = vpop.f32.mrf.mxu0
  %v1310 = vadd.f32 0.0, %v1309
  %v1311 = vpop.f32.mrf.mxu0
  %v1312 = vpop.f32.mrf.mxu0
  %v1313 = vadd.f32 0.0, %v1312
  %v1314 = vpop.f32.mrf.mxu0
  %1315 = vmatprep.mubr.bf16.mxu0 0
  %1316 = vmatmul.mubr.bf16.gmra.mxu0 %v1263
  %v1317 = vpop.f32.mrf.mxu0
  %v1318 = vadd.f32 0.0, %v1317
  %v1319 = vpop.f32.mrf.mxu0
  %v1320 = vpop.f32.mrf.mxu0
  %v1321 = vadd.f32 0.0, %v1320
  %v1322 = vpop.f32.mrf.mxu0
  %1323 = vmatprep.mubr.bf16.mxu0 0
  %1324 = vmatmul.mubr.bf16.gmra.mxu0 %v1266
  %v1325 = vpop.f32.mrf.mxu0
  %v1326 = vadd.f32 0.0, %v1325
  %v1327 = vpop.f32.mrf.mxu0
  %v1328 = vpop.f32.mrf.mxu0
  %v1329 = vadd.f32 0.0, %v1328
  %v1330 = vpop.f32.mrf.mxu0
  %1331 = vmatprep.mubr.bf16.mxu0 0
  %1332 = vmatmul.mubr.bf16.gmra.mxu0 %v1269
  %v1333 = vpop.f32.mrf.mxu0
  %v1334 = vadd.f32 0.0, %v1333
  %v1335 = vpop.f32.mrf.mxu0
  %v1336 = vpop.f32.mrf.mxu0
  %v1337 = vadd.f32 0.0, %v1336
  %v1338 = vpop.f32.mrf.mxu0
  %1339 = vdwg.mxu0
  %v1340 = vadd.f32 %v1202, %v1310
  %v1341 = vadd.f32 %v1203, %v1313
  %v1342 = vadd.f32 %v1204, %v1318
  %v1343 = vadd.f32 %v1205, %v1321
  %v1344 = vadd.f32 %v1206, %v1326
  %v1345 = vadd.f32 %v1207, %v1329
  %v1346 = vadd.f32 %v1208, %v1334
  %v1347 = vadd.f32 %v1209, %v1337
  %v1348 = vld [vmem:[%s10] sm:$0x1]
  %v1350 = vlaneseq
  %v1351 = vshrl.u32 %v1350, 7
  %v1352 = vsub.s32 0, %v1351
  %v1353 = vrot.slane %v1348, %v1352
  %v1355 = vadd.f32 %v1340, %v1353
  %v1356 = vadd.f32 %v1341, %v1353
  %v1357 = vadd.f32 %v1342, %v1353
  %v1358 = vadd.f32 %v1343, %v1353
  %v1359 = vadd.f32 %v1344, %v1353
  %v1360 = vadd.f32 %v1345, %v1353
  %v1361 = vadd.f32 %v1346, %v1353
  %v1362 = vadd.f32 %v1347, %v1353
  %1363 = vst.msk [vmem:[%s12] sm:$0xff] %vm1055, %v1355
  %1364 = vst.msk [vmem:[%s12 + $0x8] sm:$0xff] %vm1055, %v1356
  %1365 = vst.msk [vmem:[%s12 + $0x10] sm:$0xff] %vm1055, %v1357
  %1366 = vst.msk [vmem:[%s12 + $0x18] sm:$0xff] %vm1055, %v1358
  %1367 = vst.msk [vmem:[%s12 + $0x20] sm:$0xff] %vm1055, %v1359
  %1368 = vst.msk [vmem:[%s12 + $0x28] sm:$0xff] %vm1055, %v1360
  %1369 = vst.msk [vmem:[%s12 + $0x30] sm:$0xff] %vm1055, %v1361
  %1370 = vst.msk [vmem:[%s12 + $0x38] sm:$0xff] %vm1055, %v1362
  // Predicated region
  $region46: #{tpu_custom_call.1} parent=0 // pred_check
    _
  $region47: #{tpu_custom_call.1} parent=0 // pred_check_branch
    %1372 = sbr.rel (0) target = $region49
  $region48: #{tpu_custom_call.1} parent=0 // pred_region
    _
  $region49: #{tpu_custom_call.1} parent=0 // pred_fallthru
    _
  // Predicated region
  $region50: #{tpu_custom_call.1} parent=0 // pred_check
    _
  $region51: #{tpu_custom_call.1} parent=0 // pred_check_branch
    %1374 = sbr.rel (0) target = $region53
  $region52: #{tpu_custom_call.1} parent=0 // pred_region
    _
  $region53: #{tpu_custom_call.1} parent=0 // pred_fallthru
    _
  // Predicated region
  $region54: #{tpu_custom_call.1} parent=0 // pred_check
    _
  $region55: #{tpu_custom_call.1} parent=0 // pred_check_branch
    %1376 = sbr.rel (0) target = $region57
  $region56: #{tpu_custom_call.1} parent=0 // pred_region
    _
  $region57: #{tpu_custom_call.1} parent=0 // pred_fallthru
    _
  // Predicated region
  $region58: #{tpu_custom_call.1} parent=0 // pred_check
    _
  $region59: #{tpu_custom_call.1} parent=0 // pred_check_branch
    %1378 = sbr.rel (0) target = $region61
  $region60: #{tpu_custom_call.1} parent=0 // pred_region
    _
  $region61: #{tpu_custom_call.1} parent=0 // pred_fallthru
    _

</llo_original>
